<compile_context>
chip_gen: v7x
topology: tpu7x:2x2x1
jax: 0.10.0
libtpu: 0.0.40
codegen_flags: <defaults>
</compile_context>

<pallas_src>
import functools

import jax
import jax.numpy as jnp
import numpy as np
from jax import lax
from jax.experimental import pallas as pl
from jax.experimental.pallas import tpu as pltpu

_LANE = 128


def _round_up(x, m):
    return (x + m - 1) // m * m


def _pad_last(a, target):
    pad = target - a.shape[-1]
    if pad == 0:
        return a
    widths = [(0, 0)] * (a.ndim - 1) + [(0, pad)]
    return jnp.pad(a, widths)


def _tap_masks(H, W):
    """(9, H*W, 1) f32 validity mask for each 3x3 tap (zero-padded boundary)."""
    hh, ww = np.meshgrid(np.arange(H), np.arange(W), indexing="ij")
    hh, ww = hh.reshape(-1), ww.reshape(-1)
    masks = []
    for dy in range(3):
        for dx in range(3):
            oy, ox = dy - 1, dx - 1
            valid = ((hh + oy >= 0) & (hh + oy < H) &
                     (ww + ox >= 0) & (ww + ox < W))
            masks.append(valid.astype(np.float32))
    return jnp.asarray(np.stack(masks)[:, :, None])


def _bottleneck_kernel(x_ref, w1_ref, s1_ref, b1_ref,
                       w2_ref, s2_ref, b2_ref,
                       w3_ref, s3_ref, b3_ref,
                       mask_ref, out_ref, *, H, W):
    """Fused Bottleneck for one image; all matmuls are bf16->f32 on the MXU."""
    HW = H * W

    x_f32 = x_ref[0].astype(jnp.float32)                 # (HW, Cin) residual path

    # ---- conv1 (1x1) + bn1 + relu -------------------------------------------
    o1 = jnp.dot(x_f32.astype(jnp.bfloat16), w1_ref[...],
                 preferred_element_type=jnp.float32)
    o1 = jnp.maximum(o1 * s1_ref[...] + b1_ref[...], 0.0)        # (HW, P) f32

    # ---- conv2 (3x3, stride 1, pad 1) + bn2 + relu as one im2col matmul -----
    # Tap (dy, dx): output row i = h*W + w reads o1 row i + (dy-1)*W + (dx-1)
    # when (h+dy-1, w+dx-1) is inside the image.  A circular pltpu.roll of the
    # flattened slab followed by the precomputed boundary mask is exactly a
    # zero-padded spatial shift, and keeps everything lane/sublane aligned.
    taps = []
    t = 0
    for dy in range(3):
        for dx in range(3):
            shift = (-((dy - 1) * W + (dx - 1))) % HW
            rolled = pltpu.roll(o1, shift, axis=0) if shift else o1
            taps.append((rolled * mask_ref[t]).astype(jnp.bfloat16))
            t += 1
    im2col = jnp.concatenate(taps, axis=-1)                      # (HW, 9P) bf16
    o2 = jnp.dot(im2col, w2_ref[...], preferred_element_type=jnp.float32)
    o2 = jnp.maximum(o2 * s2_ref[...] + b2_ref[...], 0.0)        # (HW, P) f32

    # ---- conv3 (1x1) + bn3 ---------------------------------------------------
    o3 = jnp.dot(o2.astype(jnp.bfloat16), w3_ref[...],
                 preferred_element_type=jnp.float32)
    o3 = o3 * s3_ref[...] + b3_ref[...]                          # (HW, Cout) f32

    # ---- residual add + relu (downsample is None => residual = x) -----------
    out_ref[0] = jnp.maximum(o3 + x_f32, 0.0).astype(out_ref.dtype)


def bottleneck_forward(x_nchw, params):
    """NCHW in / NCHW out wrapper around the fused Pallas kernel.

    The NCHW<->NHWC transpose + channel padding would be a one-time layout
    decision across a whole network; they are kept here only to match the
    PyTorch interface of a single block.
    """
    (w1, s1, b1, w2, s2, b2, w3, s3, b3) = params
    N, Cin, H, W = x_nchw.shape
    P = w1.shape[1]
    Cout = w3.shape[1]
    assert Cin == Cout, "no-downsample Bottleneck requires inplanes == planes * 4"

    Cin_p = _round_up(Cin, _LANE)
    P_p = _round_up(P, _LANE)
    Cout_p = _round_up(Cout, _LANE)
    HW = H * W

    # Lane-dense activations: NCHW -> NHWC -> (N, H*W, Cin_p).
    x = jnp.transpose(x_nchw, (0, 2, 3, 1))
    x = _pad_last(x, Cin_p).reshape(N, HW, Cin_p)

    # Weights in matmul layout, zero-padded to lane width, bf16 for the MXU.
    w1_p = _pad_last(jnp.pad(w1, ((0, Cin_p - Cin), (0, 0))), P_p).astype(jnp.bfloat16)
    w2_p = jnp.pad(w2, ((0, 0), (0, 0), (0, P_p - P), (0, P_p - P)))
    w2_p = w2_p.reshape(9 * P_p, P_p).astype(jnp.bfloat16)   # rows: (dy, dx, cin)
    w3_p = _pad_last(jnp.pad(w3, ((0, P_p - P), (0, 0))), Cout_p).astype(jnp.bfloat16)

    s1_p, b1_p = _pad_last(s1, P_p), _pad_last(b1, P_p)
    s2_p, b2_p = _pad_last(s2, P_p), _pad_last(b2, P_p)
    s3_p, b3_p = _pad_last(s3, Cout_p), _pad_last(b3, Cout_p)
    masks = _tap_masks(H, W)

    kernel = functools.partial(_bottleneck_kernel, H=H, W=W)
    const2 = lambda n: (0, 0)        # same block every step -> copied to VMEM once
    const3 = lambda n: (0, 0, 0)

    out = pl.pallas_call(
        kernel,
        out_shape=jax.ShapeDtypeStruct((N, HW, Cout_p), x_nchw.dtype),
        grid_spec=pltpu.PrefetchScalarGridSpec(
            num_scalar_prefetch=0,
            grid=(N,),                                   # one image per grid step
            in_specs=[
                pl.BlockSpec((1, HW, Cin_p), lambda n: (n, 0, 0)),   # x tile
                pl.BlockSpec((Cin_p, P_p), const2),                  # w1
                pl.BlockSpec((1, P_p), const2),                      # s1
                pl.BlockSpec((1, P_p), const2),                      # b1
                pl.BlockSpec((9 * P_p, P_p), const2),                # w2 (im2col)
                pl.BlockSpec((1, P_p), const2),                      # s2
                pl.BlockSpec((1, P_p), const2),                      # b2
                pl.BlockSpec((P_p, Cout_p), const2),                 # w3
                pl.BlockSpec((1, Cout_p), const2),                   # s3
                pl.BlockSpec((1, Cout_p), const2),                   # b3
                pl.BlockSpec((9, HW, 1), const3),                    # 3x3 tap masks
            ],
            out_specs=pl.BlockSpec((1, HW, Cout_p), lambda n: (n, 0, 0)),
        ),
        compiler_params=pltpu.CompilerParams(
            dimension_semantics=("parallel",),     # shard batch over v7x's 2 TCs
            vmem_limit_bytes=32 * 1024 * 1024,     # > v5e 16 MiB default, v7x-safe
        ),
    )(x, w1_p, s1_p, b1_p, w2_p, s2_p, b2_p, w3_p, s3_p, b3_p, masks)

    out = out.reshape(N, H, W, Cout_p)[..., :Cout]
    return jnp.transpose(out, (0, 3, 1, 2))


def fold_bn(gamma, beta, mean, var, eps=1e-5):
    scale = gamma / jnp.sqrt(var + eps)
    bias = beta - mean * scale
    return (scale.reshape(1, -1).astype(jnp.float32),
            bias.reshape(1, -1).astype(jnp.float32))


def reference_forward(x_nchw, params):
    """Pure-JAX reference (lax.conv), mirroring the kernel's bf16 matmul inputs."""
    (w1, s1, b1, w2, s2, b2, w3, s3, b3) = params

    def q(a):  # round matmul operands through bf16, like the kernel's MXU inputs
        return a.astype(jnp.bfloat16).astype(jnp.float32)

    x = jnp.transpose(x_nchw, (0, 2, 3, 1))  # NHWC
    dn = ('NHWC', 'HWIO', 'NHWC')
    P = w1.shape[1]
    Cout = w3.shape[1]

    def conv(inp, w_hwio, pad):
        return lax.conv_general_dilated(inp, w_hwio, (1, 1), pad,
                                        dimension_numbers=dn,
                                        precision=lax.Precision.HIGHEST)

    o = conv(q(x), q(w1).reshape(1, 1, -1, P), [(0, 0), (0, 0)])
    o = jnp.maximum(o * s1.reshape(1, 1, 1, -1) + b1.reshape(1, 1, 1, -1), 0.0)
    o = conv(q(o), q(w2), [(1, 1), (1, 1)])
    o = jnp.maximum(o * s2.reshape(1, 1, 1, -1) + b2.reshape(1, 1, 1, -1), 0.0)
    o = conv(q(o), q(w3).reshape(1, 1, P, Cout), [(0, 0), (0, 0)])
    o = o * s3.reshape(1, 1, 1, -1) + b3.reshape(1, 1, 1, -1)
    o = jnp.maximum(o + x, 0.0)
    return jnp.transpose(o, (0, 3, 1, 2))


def make_params(key, inplanes, planes):
    expansion = 4
    outplanes = planes * expansion
    keys = jax.random.split(key, 6)

    # Conv weights in matmul-friendly layout:
    #   conv1: (Cin, P), conv2: (3, 3, P, P) [HWIO], conv3: (P, 4P)
    w1 = 0.1 * jax.random.normal(keys[0], (inplanes, planes), jnp.float32)
    w2 = 0.1 * jax.random.normal(keys[1], (3, 3, planes, planes), jnp.float32)
    w3 = 0.1 * jax.random.normal(keys[2], (planes, outplanes), jnp.float32)

    def bn_params(k, c):
        k1, k2, k3, k4 = jax.random.split(k, 4)
        gamma = 1.0 + 0.1 * jax.random.normal(k1, (c,), jnp.float32)
        beta = 0.05 * jax.random.normal(k2, (c,), jnp.float32)
        mean = 0.1 * jax.random.normal(k3, (c,), jnp.float32)
        var = 1.0 + 0.1 * jnp.abs(jax.random.normal(k4, (c,), jnp.float32))
        return fold_bn(gamma, beta, mean, var)

    s1, b1 = bn_params(keys[3], planes)
    s2, b2 = bn_params(keys[4], planes)
    s3, b3 = bn_params(keys[5], outplanes)
    return (w1, s1, b1, w2, s2, b2, w3, s3, b3)


if __name__ == "__main__":
    key = jax.random.PRNGKey(0)
    k_x, k_p = jax.random.split(key)

    planes = 4
    inplanes = planes * 4          # residual add requires inplanes == planes * expansion
    N, H, W = 2, 8, 8

    x = jax.random.normal(k_x, (N, inplanes, H, W), jnp.float32)  # NCHW like PyTorch
    params = make_params(k_p, inplanes, planes)

    out = jax.block_until_ready(bottleneck_forward(x, params))
    ref = reference_forward(x, params)

    assert out.shape == (N, inplanes, H, W)
    max_err = jnp.max(jnp.abs(out - ref))
    assert jnp.allclose(out, ref, atol=1e-2, rtol=1e-2), f"max err {max_err}"

    print("KERNEL_OK")
</pallas_src>

<mosaic_0001>
module attributes {stable_mosaic.version = 11 : i64} {
  func.func @_bottleneck_kernel(%arg0: i32, %arg1: memref<1x64x128xf32, #tpu.memory_space<vmem>>, %arg2: memref<128x128xbf16, #tpu.memory_space<vmem>>, %arg3: memref<1x128xf32, #tpu.memory_space<vmem>>, %arg4: memref<1x128xf32, #tpu.memory_space<vmem>>, %arg5: memref<1152x128xbf16, #tpu.memory_space<vmem>>, %arg6: memref<1x128xf32, #tpu.memory_space<vmem>>, %arg7: memref<1x128xf32, #tpu.memory_space<vmem>>, %arg8: memref<128x128xbf16, #tpu.memory_space<vmem>>, %arg9: memref<1x128xf32, #tpu.memory_space<vmem>>, %arg10: memref<1x128xf32, #tpu.memory_space<vmem>>, %arg11: memref<9x64x1xf32, #tpu.memory_space<vmem>>, %arg12: memref<1x64x128xf32, #tpu.memory_space<vmem>>) attributes {dimension_semantics = [#tpu.dimension_semantics<parallel>], iteration_bounds = array<i64: 2>, scalar_prefetch = 0 : i64, scratch_operands = 0 : i64, tpu.core_type = #tpu.core_type<tc>, window_params = [{transform_indices = @transform_0, window_bounds = array<i64: 1, 64, 128>}, {pipeline_mode = #tpu.pipeline_mode<synchronous>, transform_indices = @transform_1, window_bounds = array<i64: 128, 128>}, {pipeline_mode = #tpu.pipeline_mode<synchronous>, transform_indices = @transform_2, window_bounds = array<i64: 1, 128>}, {pipeline_mode = #tpu.pipeline_mode<synchronous>, transform_indices = @transform_3, window_bounds = array<i64: 1, 128>}, {pipeline_mode = #tpu.pipeline_mode<synchronous>, transform_indices = @transform_4, window_bounds = array<i64: 1152, 128>}, {pipeline_mode = #tpu.pipeline_mode<synchronous>, transform_indices = @transform_5, window_bounds = array<i64: 1, 128>}, {pipeline_mode = #tpu.pipeline_mode<synchronous>, transform_indices = @transform_6, window_bounds = array<i64: 1, 128>}, {pipeline_mode = #tpu.pipeline_mode<synchronous>, transform_indices = @transform_7, window_bounds = array<i64: 128, 128>}, {pipeline_mode = #tpu.pipeline_mode<synchronous>, transform_indices = @transform_8, window_bounds = array<i64: 1, 128>}, {pipeline_mode = #tpu.pipeline_mode<synchronous>, transform_indices = @transform_9, window_bounds = array<i64: 1, 128>}, {pipeline_mode = #tpu.pipeline_mode<synchronous>, transform_indices = @transform_10, window_bounds = array<i64: 9, 64, 1>}, {transform_indices = @transform_11, window_bounds = array<i64: 1, 64, 128>}]} {
    %c0 = arith.constant 0 : index
    %c0_0 = arith.constant 0 : index
    %c0_1 = arith.constant 0 : index
    %0 = vector.load %arg1[%c0, %c0_0, %c0_1] : memref<1x64x128xf32, #tpu.memory_space<vmem>>, vector<1x64x128xf32>
    %1 = vector.shape_cast %0 : vector<1x64x128xf32> to vector<64x128xf32>
    %2 = arith.truncf %1 : vector<64x128xf32> to vector<64x128xbf16>
    %c0_2 = arith.constant 0 : index
    %c0_3 = arith.constant 0 : index
    %3 = vector.load %arg2[%c0_2, %c0_3] : memref<128x128xbf16, #tpu.memory_space<vmem>>, vector<128x128xbf16>
    %cst = arith.constant dense<0.000000e+00> : vector<64x128xf32>
    %4 = tpu.matmul %2, %3, %cst {dimension_numbers = #tpu.dot_dimension_numbers<[1], [0], [0], [1], [0, 0, 1, 1], [], []>} : vector<64x128xbf16>, vector<128x128xbf16>, vector<64x128xf32> -> vector<64x128xf32>
    %c0_4 = arith.constant 0 : index
    %c0_5 = arith.constant 0 : index
    %5 = vector.load %arg3[%c0_4, %c0_5] : memref<1x128xf32, #tpu.memory_space<vmem>>, vector<1x128xf32>
    %6 = vector.broadcast %5 : vector<1x128xf32> to vector<64x128xf32>
    %7 = arith.mulf %4, %6 : vector<64x128xf32>
    %c0_6 = arith.constant 0 : index
    %c0_7 = arith.constant 0 : index
    %8 = vector.load %arg4[%c0_6, %c0_7] : memref<1x128xf32, #tpu.memory_space<vmem>>, vector<1x128xf32>
    %9 = vector.broadcast %8 : vector<1x128xf32> to vector<64x128xf32>
    %10 = arith.addf %7, %9 : vector<64x128xf32>
    %cst_8 = arith.constant 0.000000e+00 : f32
    %11 = vector.broadcast %cst_8 : f32 to vector<64x128xf32>
    %12 = arith.maximumf %10, %11 : vector<64x128xf32>
    %c9_i32 = arith.constant 9 : i32
    %13 = tpu.dynamic_rotate %12 by %c9_i32 dim 0 : vector<64x128xf32>, i32 -> vector<64x128xf32>
    %c0_9 = arith.constant 0 : index
    %c0_10 = arith.constant 0 : index
    %c0_11 = arith.constant 0 : index
    %14 = vector.load %arg11[%c0_9, %c0_10, %c0_11] : memref<9x64x1xf32, #tpu.memory_space<vmem>>, vector<1x64x1xf32>
    %15 = vector.shape_cast %14 : vector<1x64x1xf32> to vector<64x1xf32>
    %16 = vector.broadcast %15 : vector<64x1xf32> to vector<64x128xf32>
    %17 = arith.mulf %13, %16 : vector<64x128xf32>
    %18 = arith.truncf %17 : vector<64x128xf32> to vector<64x128xbf16>
    %c8_i32 = arith.constant 8 : i32
    %19 = tpu.dynamic_rotate %12 by %c8_i32 dim 0 : vector<64x128xf32>, i32 -> vector<64x128xf32>
    %c1 = arith.constant 1 : index
    %c0_12 = arith.constant 0 : index
    %c0_13 = arith.constant 0 : index
    %20 = vector.load %arg11[%c1, %c0_12, %c0_13] : memref<9x64x1xf32, #tpu.memory_space<vmem>>, vector<1x64x1xf32>
    %21 = vector.shape_cast %20 : vector<1x64x1xf32> to vector<64x1xf32>
    %22 = vector.broadcast %21 : vector<64x1xf32> to vector<64x128xf32>
    %23 = arith.mulf %19, %22 : vector<64x128xf32>
    %24 = arith.truncf %23 : vector<64x128xf32> to vector<64x128xbf16>
    %c7_i32 = arith.constant 7 : i32
    %25 = tpu.dynamic_rotate %12 by %c7_i32 dim 0 : vector<64x128xf32>, i32 -> vector<64x128xf32>
    %c2 = arith.constant 2 : index
    %c0_14 = arith.constant 0 : index
    %c0_15 = arith.constant 0 : index
    %26 = vector.load %arg11[%c2, %c0_14, %c0_15] : memref<9x64x1xf32, #tpu.memory_space<vmem>>, vector<1x64x1xf32>
    %27 = vector.shape_cast %26 : vector<1x64x1xf32> to vector<64x1xf32>
    %28 = vector.broadcast %27 : vector<64x1xf32> to vector<64x128xf32>
    %29 = arith.mulf %25, %28 : vector<64x128xf32>
    %30 = arith.truncf %29 : vector<64x128xf32> to vector<64x128xbf16>
    %c1_i32 = arith.constant 1 : i32
    %31 = tpu.dynamic_rotate %12 by %c1_i32 dim 0 : vector<64x128xf32>, i32 -> vector<64x128xf32>
    %c3 = arith.constant 3 : index
    %c0_16 = arith.constant 0 : index
    %c0_17 = arith.constant 0 : index
    %32 = vector.load %arg11[%c3, %c0_16, %c0_17] : memref<9x64x1xf32, #tpu.memory_space<vmem>>, vector<1x64x1xf32>
    %33 = vector.shape_cast %32 : vector<1x64x1xf32> to vector<64x1xf32>
    %34 = vector.broadcast %33 : vector<64x1xf32> to vector<64x128xf32>
    %35 = arith.mulf %31, %34 : vector<64x128xf32>
    %36 = arith.truncf %35 : vector<64x128xf32> to vector<64x128xbf16>
    %c4 = arith.constant 4 : index
    %c0_18 = arith.constant 0 : index
    %c0_19 = arith.constant 0 : index
    %37 = vector.load %arg11[%c4, %c0_18, %c0_19] : memref<9x64x1xf32, #tpu.memory_space<vmem>>, vector<1x64x1xf32>
    %38 = vector.shape_cast %37 : vector<1x64x1xf32> to vector<64x1xf32>
    %39 = vector.broadcast %38 : vector<64x1xf32> to vector<64x128xf32>
    %40 = arith.mulf %12, %39 : vector<64x128xf32>
    %41 = arith.truncf %40 : vector<64x128xf32> to vector<64x128xbf16>
    %c63_i32 = arith.constant 63 : i32
    %42 = tpu.dynamic_rotate %12 by %c63_i32 dim 0 : vector<64x128xf32>, i32 -> vector<64x128xf32>
    %c5 = arith.constant 5 : index
    %c0_20 = arith.constant 0 : index
    %c0_21 = arith.constant 0 : index
    %43 = vector.load %arg11[%c5, %c0_20, %c0_21] : memref<9x64x1xf32, #tpu.memory_space<vmem>>, vector<1x64x1xf32>
    %44 = vector.shape_cast %43 : vector<1x64x1xf32> to vector<64x1xf32>
    %45 = vector.broadcast %44 : vector<64x1xf32> to vector<64x128xf32>
    %46 = arith.mulf %42, %45 : vector<64x128xf32>
    %47 = arith.truncf %46 : vector<64x128xf32> to vector<64x128xbf16>
    %c57_i32 = arith.constant 57 : i32
    %48 = tpu.dynamic_rotate %12 by %c57_i32 dim 0 : vector<64x128xf32>, i32 -> vector<64x128xf32>
    %c6 = arith.constant 6 : index
    %c0_22 = arith.constant 0 : index
    %c0_23 = arith.constant 0 : index
    %49 = vector.load %arg11[%c6, %c0_22, %c0_23] : memref<9x64x1xf32, #tpu.memory_space<vmem>>, vector<1x64x1xf32>
    %50 = vector.shape_cast %49 : vector<1x64x1xf32> to vector<64x1xf32>
    %51 = vector.broadcast %50 : vector<64x1xf32> to vector<64x128xf32>
    %52 = arith.mulf %48, %51 : vector<64x128xf32>
    %53 = arith.truncf %52 : vector<64x128xf32> to vector<64x128xbf16>
    %c56_i32 = arith.constant 56 : i32
    %54 = tpu.dynamic_rotate %12 by %c56_i32 dim 0 : vector<64x128xf32>, i32 -> vector<64x128xf32>
    %c7 = arith.constant 7 : index
    %c0_24 = arith.constant 0 : index
    %c0_25 = arith.constant 0 : index
    %55 = vector.load %arg11[%c7, %c0_24, %c0_25] : memref<9x64x1xf32, #tpu.memory_space<vmem>>, vector<1x64x1xf32>
    %56 = vector.shape_cast %55 : vector<1x64x1xf32> to vector<64x1xf32>
    %57 = vector.broadcast %56 : vector<64x1xf32> to vector<64x128xf32>
    %58 = arith.mulf %54, %57 : vector<64x128xf32>
    %59 = arith.truncf %58 : vector<64x128xf32> to vector<64x128xbf16>
    %c55_i32 = arith.constant 55 : i32
    %60 = tpu.dynamic_rotate %12 by %c55_i32 dim 0 : vector<64x128xf32>, i32 -> vector<64x128xf32>
    %c8 = arith.constant 8 : index
    %c0_26 = arith.constant 0 : index
    %c0_27 = arith.constant 0 : index
    %61 = vector.load %arg11[%c8, %c0_26, %c0_27] : memref<9x64x1xf32, #tpu.memory_space<vmem>>, vector<1x64x1xf32>
    %62 = vector.shape_cast %61 : vector<1x64x1xf32> to vector<64x1xf32>
    %63 = vector.broadcast %62 : vector<64x1xf32> to vector<64x128xf32>
    %64 = arith.mulf %60, %63 : vector<64x128xf32>
    %65 = arith.truncf %64 : vector<64x128xf32> to vector<64x128xbf16>
    %66 = tpu.concatenate %18, %24, %30, %36, %41, %47, %53, %59, %65 in 1 : vector<64x128xbf16>, vector<64x128xbf16>, vector<64x128xbf16>, vector<64x128xbf16>, vector<64x128xbf16>, vector<64x128xbf16>, vector<64x128xbf16>, vector<64x128xbf16>, vector<64x128xbf16> -> vector<64x1152xbf16>
    %c0_28 = arith.constant 0 : index
    %c0_29 = arith.constant 0 : index
    %67 = vector.load %arg5[%c0_28, %c0_29] : memref<1152x128xbf16, #tpu.memory_space<vmem>>, vector<1152x128xbf16>
    %cst_30 = arith.constant dense<0.000000e+00> : vector<64x128xf32>
    %68 = tpu.matmul %66, %67, %cst_30 {dimension_numbers = #tpu.dot_dimension_numbers<[1], [0], [0], [1], [0, 0, 1, 1], [], []>} : vector<64x1152xbf16>, vector<1152x128xbf16>, vector<64x128xf32> -> vector<64x128xf32>
    %c0_31 = arith.constant 0 : index
    %c0_32 = arith.constant 0 : index
    %69 = vector.load %arg6[%c0_31, %c0_32] : memref<1x128xf32, #tpu.memory_space<vmem>>, vector<1x128xf32>
    %70 = vector.broadcast %69 : vector<1x128xf32> to vector<64x128xf32>
    %71 = arith.mulf %68, %70 : vector<64x128xf32>
    %c0_33 = arith.constant 0 : index
    %c0_34 = arith.constant 0 : index
    %72 = vector.load %arg7[%c0_33, %c0_34] : memref<1x128xf32, #tpu.memory_space<vmem>>, vector<1x128xf32>
    %73 = vector.broadcast %72 : vector<1x128xf32> to vector<64x128xf32>
    %74 = arith.addf %71, %73 : vector<64x128xf32>
    %cst_35 = arith.constant 0.000000e+00 : f32
    %75 = vector.broadcast %cst_35 : f32 to vector<64x128xf32>
    %76 = arith.maximumf %74, %75 : vector<64x128xf32>
    %77 = arith.truncf %76 : vector<64x128xf32> to vector<64x128xbf16>
    %c0_36 = arith.constant 0 : index
    %c0_37 = arith.constant 0 : index
    %78 = vector.load %arg8[%c0_36, %c0_37] : memref<128x128xbf16, #tpu.memory_space<vmem>>, vector<128x128xbf16>
    %cst_38 = arith.constant dense<0.000000e+00> : vector<64x128xf32>
    %79 = tpu.matmul %77, %78, %cst_38 {dimension_numbers = #tpu.dot_dimension_numbers<[1], [0], [0], [1], [0, 0, 1, 1], [], []>} : vector<64x128xbf16>, vector<128x128xbf16>, vector<64x128xf32> -> vector<64x128xf32>
    %c0_39 = arith.constant 0 : index
    %c0_40 = arith.constant 0 : index
    %80 = vector.load %arg9[%c0_39, %c0_40] : memref<1x128xf32, #tpu.memory_space<vmem>>, vector<1x128xf32>
    %81 = vector.broadcast %80 : vector<1x128xf32> to vector<64x128xf32>
    %82 = arith.mulf %79, %81 : vector<64x128xf32>
    %c0_41 = arith.constant 0 : index
    %c0_42 = arith.constant 0 : index
    %83 = vector.load %arg10[%c0_41, %c0_42] : memref<1x128xf32, #tpu.memory_space<vmem>>, vector<1x128xf32>
    %84 = vector.broadcast %83 : vector<1x128xf32> to vector<64x128xf32>
    %85 = arith.addf %82, %84 : vector<64x128xf32>
    %86 = arith.addf %85, %1 : vector<64x128xf32>
    %cst_43 = arith.constant 0.000000e+00 : f32
    %87 = vector.broadcast %cst_43 : f32 to vector<64x128xf32>
    %88 = arith.maximumf %86, %87 : vector<64x128xf32>
    %c0_44 = arith.constant 0 : index
    %c0_45 = arith.constant 0 : index
    %c0_46 = arith.constant 0 : index
    %89 = vector.load %arg12[%c0_44, %c0_45, %c0_46] : memref<1x64x128xf32, #tpu.memory_space<vmem>>, vector<1x64x128xf32>
    %90 = vector.shape_cast %89 : vector<1x64x128xf32> to vector<64x128xf32>
    %91 = vector.shape_cast %88 : vector<64x128xf32> to vector<1x64x128xf32>
    tpu.vector_store %arg12[%c0_44, %c0_45, %c0_46], %91 {strides = array<i32>} : memref<1x64x128xf32, #tpu.memory_space<vmem>>, vector<1x64x128xf32>,
    return
  }
  func.func @transform_0(%arg0: i32) -> (i32, i32, i32) {
    %c0_i32 = arith.constant 0 : i32
    %c0_i32_0 = arith.constant 0 : i32
    %c0_i32_1 = arith.constant 0 : i32
    return %arg0, %c0_i32, %c0_i32_0 : i32, i32, i32
  }
  func.func @transform_1(%arg0: i32) -> (i32, i32) {
    %c0_i32 = arith.constant 0 : i32
    %c0_i32_0 = arith.constant 0 : i32
    %c0_i32_1 = arith.constant 0 : i32
    return %c0_i32, %c0_i32_0 : i32, i32
  }
  func.func @transform_2(%arg0: i32) -> (i32, i32) {
    %c0_i32 = arith.constant 0 : i32
    %c0_i32_0 = arith.constant 0 : i32
    %c0_i32_1 = arith.constant 0 : i32
    return %c0_i32, %c0_i32_0 : i32, i32
  }
  func.func @transform_3(%arg0: i32) -> (i32, i32) {
    %c0_i32 = arith.constant 0 : i32
    %c0_i32_0 = arith.constant 0 : i32
    %c0_i32_1 = arith.constant 0 : i32
    return %c0_i32, %c0_i32_0 : i32, i32
  }
  func.func @transform_4(%arg0: i32) -> (i32, i32) {
    %c0_i32 = arith.constant 0 : i32
    %c0_i32_0 = arith.constant 0 : i32
    %c0_i32_1 = arith.constant 0 : i32
    return %c0_i32, %c0_i32_0 : i32, i32
  }
  func.func @transform_5(%arg0: i32) -> (i32, i32) {
    %c0_i32 = arith.constant 0 : i32
    %c0_i32_0 = arith.constant 0 : i32
    %c0_i32_1 = arith.constant 0 : i32
    return %c0_i32, %c0_i32_0 : i32, i32
  }
  func.func @transform_6(%arg0: i32) -> (i32, i32) {
    %c0_i32 = arith.constant 0 : i32
    %c0_i32_0 = arith.constant 0 : i32
    %c0_i32_1 = arith.constant 0 : i32
    return %c0_i32, %c0_i32_0 : i32, i32
  }
  func.func @transform_7(%arg0: i32) -> (i32, i32) {
    %c0_i32 = arith.constant 0 : i32
    %c0_i32_0 = arith.constant 0 : i32
    %c0_i32_1 = arith.constant 0 : i32
    return %c0_i32, %c0_i32_0 : i32, i32
  }
  func.func @transform_8(%arg0: i32) -> (i32, i32) {
    %c0_i32 = arith.constant 0 : i32
    %c0_i32_0 = arith.constant 0 : i32
    %c0_i32_1 = arith.constant 0 : i32
    return %c0_i32, %c0_i32_0 : i32, i32
  }
  func.func @transform_9(%arg0: i32) -> (i32, i32) {
    %c0_i32 = arith.constant 0 : i32
    %c0_i32_0 = arith.constant 0 : i32
    %c0_i32_1 = arith.constant 0 : i32
    return %c0_i32, %c0_i32_0 : i32, i32
  }
  func.func @transform_10(%arg0: i32) -> (i32, i32, i32) {
    %c0_i32 = arith.constant 0 : i32
    %c0_i32_0 = arith.constant 0 : i32
    %c0_i32_1 = arith.constant 0 : i32
    %c0_i32_2 = arith.constant 0 : i32
    return %c0_i32, %c0_i32_0, %c0_i32_1 : i32, i32, i32
  }
  func.func @transform_11(%arg0: i32) -> (i32, i32, i32) {
    %c0_i32 = arith.constant 0 : i32
    %c0_i32_0 = arith.constant 0 : i32
    %c0_i32_1 = arith.constant 0 : i32
    return %arg0, %c0_i32, %c0_i32_0 : i32, i32, i32
  }
}

</mosaic_0001>

<llo_original>
// kernel: tpu_custom_call.1
$region0: #{tpu_custom_call.1}
  #allocation0 [shape = 'u32[]', space=smem, size = 0x4, offset = 0x4, fixed_abs, tag = 'smem constant byte address 0x4 - core index']
  #allocation1 [shape = 'u32[144,128]{1,0:T(1,128)}', space=vmem, size = 0x12000, scoped, tag = 'internal scratch']
  %s0 = inlined_call_operand.hbm [shape: f32[2,64,128], index: 0, kind: input, shape index: {}]
  %s1 = inlined_call_operand.hbm [shape: bf16[128,128], index: 1, kind: input, shape index: {}]
  %s2 = inlined_call_operand.vmem [shape: f32[1,128], index: 2, kind: input, shape index: {}]
  %s3 = inlined_call_operand.vmem [shape: f32[1,128], index: 3, kind: input, shape index: {}]
  %s4 = inlined_call_operand.vmem [shape: bf16[1152,128], index: 4, kind: input, shape index: {}]
  %s5 = inlined_call_operand.vmem [shape: f32[1,128], index: 5, kind: input, shape index: {}]
  %s6 = inlined_call_operand.vmem [shape: f32[1,128], index: 6, kind: input, shape index: {}]
  %s7 = inlined_call_operand.hbm [shape: bf16[128,128], index: 7, kind: input, shape index: {}]
  %s8 = inlined_call_operand.vmem [shape: f32[1,128], index: 8, kind: input, shape index: {}]
  %s9 = inlined_call_operand.vmem [shape: f32[1,128], index: 9, kind: input, shape index: {}]
  %s10 = inlined_call_operand.vmem [shape: f32[9,64,1], index: 10, kind: input, shape index: {}]
  %s11 = inlined_call_operand.hbm [shape: f32[2,64,128], index: 11, kind: output, shape index: {}]
  %s12 = sld [smem:[#allocation0]]
  $region89: #{tpu_custom_call.1} parent=0
    _
  %s14 = ssub.s32 1, %s12
  %s15 = scalar_select 0, %s14, %s12
  $region1: #{tpu_custom_call.1} parent=0
    #allocation2 [shape = 'u8[65536]{0}', space=vmem, size = 0x10000, scoped, tag = 'input window, operand 0']
    #allocation3 [shape = 's32[2]{0}', space=sflag, size = 0x8, scoped, tag = 'scoped memory for tpu_custom_call.1']
    #allocation4 [shape = 's32[2]{0}', space=sflag, size = 0x8, scoped, tag = 'scoped memory for tpu_custom_call.1']
    #allocation5 [shape = 'u8[32768]{0}', space=vmem, size = 0x8000, scoped, tag = 'input window, operand 1, single buffered']
    #allocation6 [shape = 's32[1]{0}', space=sflag, size = 0x4, scoped, tag = 'scoped memory for tpu_custom_call.1']
    #allocation7 [shape = 'u8[32768]{0}', space=vmem, size = 0x8000, scoped, tag = 'input window, operand 7, single buffered']
    #allocation8 [shape = 'u8[65536]{0}', space=vmem, size = 0x10000, scoped, tag = 'output window, operand 0']
    %16 = vsyncpa [#allocation3], 0
    %s17 = scalar_lea.sflag [#allocation3], 1
    %18 = vsyncpa %s17, 0
    %19 = vsyncpa [#allocation6], 0
    %20 = vsyncpa [#allocation4], 0
    %s21 = scalar_lea.sflag [#allocation4], 1
    %22 = vsyncpa %s21, 0
    loop: start=0, step=1, limit=4
    $region2: #{tpu_custom_call.1} parent=1 // loop_pre_header
      _
    $region3: #{tpu_custom_call.1} parent=1 // loop_header
      %s24 = sphi 0, %s28
      %p25 = scmp.ge.s32.totalorder %s24, 4
      %s34 = sphi 0, %s36
      %s37 = sphi 0, %s34
      %s38 = sphi 0, %s37
      %s54 = sphi 0, %s38
      %s58 = sphi 0, %s58
      %s60 = sphi 0, %s58
      %s61 = sphi 0, %s60
      %s75 = sphi 0, %s61
      %s79 = sphi 0, %s79
      %s81 = sphi 0, %s79
      %s82 = sphi 0, %s81
      %s96 = sphi 0, %s82
      %s100 = sphi 0, %s100
      %s102 = sphi 0, %s100
      %s103 = sphi 0, %s102
      %s117 = sphi 0, %s103
      %s121 = sphi 0, %s121
      %s123 = sphi 0, %s121
      %s124 = sphi 0, %s123
      %s138 = sphi 0, %s124
      %s142 = sphi 0, %s142
      %s144 = sphi 0, %s142
      %s145 = sphi 0, %s144
      %s159 = sphi 0, %s145
      %s163 = sphi 0, %s163
      %s165 = sphi 0, %s163
      %s166 = sphi 0, %s165
      %s180 = sphi 0, %s166
      %s184 = sphi 0, %s184
      %s186 = sphi 0, %s184
      %s187 = sphi 0, %s186
      %s201 = sphi 0, %s187
      %s205 = sphi 0, %s205
      %s207 = sphi 0, %s205
      %s208 = sphi 0, %s207
      %s222 = sphi 0, %s208
      %s226 = sphi 0, %s226
      %s228 = sphi 0, %s226
      %s229 = sphi 0, %s228
      %s243 = sphi 0, %s229
      %s247 = sphi 0, %s247
      %s249 = sphi 0, %s247
      %s250 = sphi 0, %s249
      %s264 = sphi 0, %s250
      %s270 = sphi 0, %s272
      %s273 = sphi 0, %s270
      %s274 = sphi 0, %s273
      %s290 = sphi 0, %s274
    $region4: #{tpu_custom_call.1} parent=1 // loop_header_branch
      %27 = sbr.rel (%p25) target = $region8
    $region5: #{tpu_custom_call.1} parent=1 // loop_body
      %s29 = ssub.s32 %s24, 1
      %s30 = ssub.s32 %s24, 2
      %s31 = sadd.s32 %s24, 1
      %s32 = ssub.s32 %s24, %s31
      %p33 = scmp.eq.s32.totalorder %s32, 0
      %s35 = sadd.s32 %s34, 1
      %s36 = scalar_select %p33, %s34, %s35
      %p39 = pneg %p33
      %p40 = scmp.eq.s32.totalorder %s24, 1
      %p41 = por %p39, %p40
      %p42 = scmp.ne.s32.totalorder %s34, %s37
      %p43 = scmp.eq.s32.totalorder %s24, 0
      %p44 = por %p42, %p43
      %p45 = scmp.ne.s32.totalorder %s34, %s37
      %p46 = scmp.eq.s32.totalorder %s29, 1
      %p47 = por %p45, %p46
      %p48 = scmp.ne.s32.totalorder %s37, %s38
      %p49 = scmp.eq.s32.totalorder %s29, 0
      %p50 = por %p48, %p49
      %p51 = scmp.ne.s32.totalorder %s37, %s38
      %p52 = scmp.eq.s32.totalorder %s30, 1
      %p53 = por %p51, %p52
      %p55 = scmp.ne.s32.totalorder %s38, %s54
      %p56 = scmp.eq.s32.totalorder %s30, 0
      %p57 = por %p55, %p56
      %s59 = sadd.s32 %s58, 1
      %p62 = scmp.eq.s32.totalorder %s24, 1
      %p63 = scmp.ne.s32.totalorder %s58, %s60
      %p64 = scmp.eq.s32.totalorder %s24, 0
      %p65 = por %p63, %p64
      %p66 = scmp.ne.s32.totalorder %s58, %s60
      %p67 = scmp.eq.s32.totalorder %s29, 1
      %p68 = por %p66, %p67
      %p69 = scmp.ne.s32.totalorder %s60, %s61
      %p70 = scmp.eq.s32.totalorder %s29, 0
      %p71 = por %p69, %p70
      %p72 = scmp.ne.s32.totalorder %s60, %s61
      %p73 = scmp.eq.s32.totalorder %s30, 1
      %p74 = por %p72, %p73
      %p76 = scmp.ne.s32.totalorder %s61, %s75
      %p77 = scmp.eq.s32.totalorder %s30, 0
      %p78 = por %p76, %p77
      %s80 = sadd.s32 %s79, 1
      %p83 = scmp.eq.s32.totalorder %s24, 1
      %p84 = scmp.ne.s32.totalorder %s79, %s81
      %p85 = scmp.eq.s32.totalorder %s24, 0
      %p86 = por %p84, %p85
      %p87 = scmp.ne.s32.totalorder %s79, %s81
      %p88 = scmp.eq.s32.totalorder %s29, 1
      %p89 = por %p87, %p88
      %p90 = scmp.ne.s32.totalorder %s81, %s82
      %p91 = scmp.eq.s32.totalorder %s29, 0
      %p92 = por %p90, %p91
      %p93 = scmp.ne.s32.totalorder %s81, %s82
      %p94 = scmp.eq.s32.totalorder %s30, 1
      %p95 = por %p93, %p94
      %p97 = scmp.ne.s32.totalorder %s82, %s96
      %p98 = scmp.eq.s32.totalorder %s30, 0
      %p99 = por %p97, %p98
      %s101 = sadd.s32 %s100, 1
      %p104 = scmp.eq.s32.totalorder %s24, 1
      %p105 = scmp.ne.s32.totalorder %s100, %s102
      %p106 = scmp.eq.s32.totalorder %s24, 0
      %p107 = por %p105, %p106
      %p108 = scmp.ne.s32.totalorder %s100, %s102
      %p109 = scmp.eq.s32.totalorder %s29, 1
      %p110 = por %p108, %p109
      %p111 = scmp.ne.s32.totalorder %s102, %s103
      %p112 = scmp.eq.s32.totalorder %s29, 0
      %p113 = por %p111, %p112
      %p114 = scmp.ne.s32.totalorder %s102, %s103
      %p115 = scmp.eq.s32.totalorder %s30, 1
      %p116 = por %p114, %p115
      %p118 = scmp.ne.s32.totalorder %s103, %s117
      %p119 = scmp.eq.s32.totalorder %s30, 0
      %p120 = por %p118, %p119
      %s122 = sadd.s32 %s121, 1
      %p125 = scmp.eq.s32.totalorder %s24, 1
      %p126 = scmp.ne.s32.totalorder %s121, %s123
      %p127 = scmp.eq.s32.totalorder %s24, 0
      %p128 = por %p126, %p127
      %p129 = scmp.ne.s32.totalorder %s121, %s123
      %p130 = scmp.eq.s32.totalorder %s29, 1
      %p131 = por %p129, %p130
      %p132 = scmp.ne.s32.totalorder %s123, %s124
      %p133 = scmp.eq.s32.totalorder %s29, 0
      %p134 = por %p132, %p133
      %p135 = scmp.ne.s32.totalorder %s123, %s124
      %p136 = scmp.eq.s32.totalorder %s30, 1
      %p137 = por %p135, %p136
      %p139 = scmp.ne.s32.totalorder %s124, %s138
      %p140 = scmp.eq.s32.totalorder %s30, 0
      %p141 = por %p139, %p140
      %s143 = sadd.s32 %s142, 1
      %p146 = scmp.eq.s32.totalorder %s24, 1
      %p147 = scmp.ne.s32.totalorder %s142, %s144
      %p148 = scmp.eq.s32.totalorder %s24, 0
      %p149 = por %p147, %p148
      %p150 = scmp.ne.s32.totalorder %s142, %s144
      %p151 = scmp.eq.s32.totalorder %s29, 1
      %p152 = por %p150, %p151
      %p153 = scmp.ne.s32.totalorder %s144, %s145
      %p154 = scmp.eq.s32.totalorder %s29, 0
      %p155 = por %p153, %p154
      %p156 = scmp.ne.s32.totalorder %s144, %s145
      %p157 = scmp.eq.s32.totalorder %s30, 1
      %p158 = por %p156, %p157
      %p160 = scmp.ne.s32.totalorder %s145, %s159
      %p161 = scmp.eq.s32.totalorder %s30, 0
      %p162 = por %p160, %p161
      %s164 = sadd.s32 %s163, 1
      %p167 = scmp.eq.s32.totalorder %s24, 1
      %p168 = scmp.ne.s32.totalorder %s163, %s165
      %p169 = scmp.eq.s32.totalorder %s24, 0
      %p170 = por %p168, %p169
      %p171 = scmp.ne.s32.totalorder %s163, %s165
      %p172 = scmp.eq.s32.totalorder %s29, 1
      %p173 = por %p171, %p172
      %p174 = scmp.ne.s32.totalorder %s165, %s166
      %p175 = scmp.eq.s32.totalorder %s29, 0
      %p176 = por %p174, %p175
      %p177 = scmp.ne.s32.totalorder %s165, %s166
      %p178 = scmp.eq.s32.totalorder %s30, 1
      %p179 = por %p177, %p178
      %p181 = scmp.ne.s32.totalorder %s166, %s180
      %p182 = scmp.eq.s32.totalorder %s30, 0
      %p183 = por %p181, %p182
      %s185 = sadd.s32 %s184, 1
      %p188 = scmp.eq.s32.totalorder %s24, 1
      %p189 = scmp.ne.s32.totalorder %s184, %s186
      %p190 = scmp.eq.s32.totalorder %s24, 0
      %p191 = por %p189, %p190
      %p192 = scmp.ne.s32.totalorder %s184, %s186
      %p193 = scmp.eq.s32.totalorder %s29, 1
      %p194 = por %p192, %p193
      %p195 = scmp.ne.s32.totalorder %s186, %s187
      %p196 = scmp.eq.s32.totalorder %s29, 0
      %p197 = por %p195, %p196
      %p198 = scmp.ne.s32.totalorder %s186, %s187
      %p199 = scmp.eq.s32.totalorder %s30, 1
      %p200 = por %p198, %p199
      %p202 = scmp.ne.s32.totalorder %s187, %s201
      %p203 = scmp.eq.s32.totalorder %s30, 0
      %p204 = por %p202, %p203
      %s206 = sadd.s32 %s205, 1
      %p209 = scmp.eq.s32.totalorder %s24, 1
      %p210 = scmp.ne.s32.totalorder %s205, %s207
      %p211 = scmp.eq.s32.totalorder %s24, 0
      %p212 = por %p210, %p211
      %p213 = scmp.ne.s32.totalorder %s205, %s207
      %p214 = scmp.eq.s32.totalorder %s29, 1
      %p215 = por %p213, %p214
      %p216 = scmp.ne.s32.totalorder %s207, %s208
      %p217 = scmp.eq.s32.totalorder %s29, 0
      %p218 = por %p216, %p217
      %p219 = scmp.ne.s32.totalorder %s207, %s208
      %p220 = scmp.eq.s32.totalorder %s30, 1
      %p221 = por %p219, %p220
      %p223 = scmp.ne.s32.totalorder %s208, %s222
      %p224 = scmp.eq.s32.totalorder %s30, 0
      %p225 = por %p223, %p224
      %s227 = sadd.s32 %s226, 1
      %p230 = scmp.eq.s32.totalorder %s24, 1
      %p231 = scmp.ne.s32.totalorder %s226, %s228
      %p232 = scmp.eq.s32.totalorder %s24, 0
      %p233 = por %p231, %p232
      %p234 = scmp.ne.s32.totalorder %s226, %s228
      %p235 = scmp.eq.s32.totalorder %s29, 1
      %p236 = por %p234, %p235
      %p237 = scmp.ne.s32.totalorder %s228, %s229
      %p238 = scmp.eq.s32.totalorder %s29, 0
      %p239 = por %p237, %p238
      %p240 = scmp.ne.s32.totalorder %s228, %s229
      %p241 = scmp.eq.s32.totalorder %s30, 1
      %p242 = por %p240, %p241
      %p244 = scmp.ne.s32.totalorder %s229, %s243
      %p245 = scmp.eq.s32.totalorder %s30, 0
      %p246 = por %p244, %p245
      %s248 = sadd.s32 %s247, 1
      %p251 = scmp.eq.s32.totalorder %s24, 1
      %p252 = scmp.ne.s32.totalorder %s247, %s249
      %p253 = scmp.eq.s32.totalorder %s24, 0
      %p254 = por %p252, %p253
      %p255 = scmp.ne.s32.totalorder %s247, %s249
      %p256 = scmp.eq.s32.totalorder %s29, 1
      %p257 = por %p255, %p256
      %p258 = scmp.ne.s32.totalorder %s249, %s250
      %p259 = scmp.eq.s32.totalorder %s29, 0
      %p260 = por %p258, %p259
      %p261 = scmp.ne.s32.totalorder %s249, %s250
      %p262 = scmp.eq.s32.totalorder %s30, 1
      %p263 = por %p261, %p262
      %p265 = scmp.ne.s32.totalorder %s250, %s264
      %p266 = scmp.eq.s32.totalorder %s30, 0
      %p267 = por %p265, %p266
      %s268 = ssub.s32 %s24, %s31
      %p269 = scmp.eq.s32.totalorder %s268, 0
      %s271 = sadd.s32 %s270, 1
      %s272 = scalar_select %p269, %s270, %s271
      %p275 = pneg %p269
      %p276 = scmp.eq.s32.totalorder %s24, 1
      %p277 = por %p275, %p276
      %p278 = scmp.ne.s32.totalorder %s270, %s273
      %p279 = scmp.eq.s32.totalorder %s24, 0
      %p280 = por %p278, %p279
      %p281 = scmp.ne.s32.totalorder %s270, %s273
      %p282 = scmp.eq.s32.totalorder %s29, 1
      %p283 = por %p281, %p282
      %p284 = scmp.ne.s32.totalorder %s273, %s274
      %p285 = scmp.eq.s32.totalorder %s29, 0
      %p286 = por %p284, %p285
      %p287 = scmp.ne.s32.totalorder %s273, %s274
      %p288 = scmp.eq.s32.totalorder %s30, 1
      %p289 = por %p287, %p288
      %p291 = scmp.ne.s32.totalorder %s274, %s290
      %p292 = scmp.eq.s32.totalorder %s30, 0
      %p293 = por %p291, %p292
      %p294 = scmp.le.s32.totalorder 1, %s24
      %p295 = scmp.lt.s32.totalorder %s24, 3
      %p296 = pnand %p294, %p295
      %p297 = pneg %p296
      // Predicated region
      $region9: #{tpu_custom_call.1} parent=5 // pred_check
        _
      $region10: #{tpu_custom_call.1} parent=5 // pred_check_branch
        %299 = sbr.rel (%p296) target = $region12
      $region11: #{tpu_custom_call.1} parent=5 // pred_region
        %s300 = ssub.s32 %s24, 1
        // Predicated region
        $region13: #{tpu_custom_call.1} parent=11 // pred_check
          %p301 = pneg %p71
        $region14: #{tpu_custom_call.1} parent=11 // pred_check_branch
          %303 = sbr.rel (%p301) target = $region16
        $region15: #{tpu_custom_call.1} parent=11 // pred_region
          %s305 = ssub.s32 1024, 1024
          %306 = vsyncadd [#allocation6], %s305
          %s307 = sshll.u32 [#allocation5], 4
          %s308 = int_to_ptr.vmem [resolvable:$true] %s307
          %313 = dma.hbm_to_vmem [thread:$0]  %s1, 1024, %s308, [#allocation6], 64, 64, 4
        $region16: #{tpu_custom_call.1} parent=11 // pred_fallthru
          _
        // Predicated region
        $region17: #{tpu_custom_call.1} parent=11 // pred_check
          %p314 = pneg %p92
        $region18: #{tpu_custom_call.1} parent=11 // pred_check_branch
          %316 = sbr.rel (%p314) target = $region20
        $region19: #{tpu_custom_call.1} parent=11 // pred_region
          _
        $region20: #{tpu_custom_call.1} parent=11 // pred_fallthru
          _
        // Predicated region
        $region21: #{tpu_custom_call.1} parent=11 // pred_check
          %p317 = pneg %p113
        $region22: #{tpu_custom_call.1} parent=11 // pred_check_branch
          %319 = sbr.rel (%p317) target = $region24
        $region23: #{tpu_custom_call.1} parent=11 // pred_region
          _
        $region24: #{tpu_custom_call.1} parent=11 // pred_fallthru
          _
        // Predicated region
        $region25: #{tpu_custom_call.1} parent=11 // pred_check
          %p320 = pneg %p134
        $region26: #{tpu_custom_call.1} parent=11 // pred_check_branch
          %322 = sbr.rel (%p320) target = $region28
        $region27: #{tpu_custom_call.1} parent=11 // pred_region
          _
        $region28: #{tpu_custom_call.1} parent=11 // pred_fallthru
          _
        // Predicated region
        $region29: #{tpu_custom_call.1} parent=11 // pred_check
          %p323 = pneg %p155
        $region30: #{tpu_custom_call.1} parent=11 // pred_check_branch
          %325 = sbr.rel (%p323) target = $region32
        $region31: #{tpu_custom_call.1} parent=11 // pred_region
          _
        $region32: #{tpu_custom_call.1} parent=11 // pred_fallthru
          _
        // Predicated region
        $region33: #{tpu_custom_call.1} parent=11 // pred_check
          %p326 = pneg %p176
        $region34: #{tpu_custom_call.1} parent=11 // pred_check_branch
          %328 = sbr.rel (%p326) target = $region36
        $region35: #{tpu_custom_call.1} parent=11 // pred_region
          _
        $region36: #{tpu_custom_call.1} parent=11 // pred_fallthru
          _
        // Predicated region
        $region37: #{tpu_custom_call.1} parent=11 // pred_check
          %p329 = pneg %p197
        $region38: #{tpu_custom_call.1} parent=11 // pred_check_branch
          %331 = sbr.rel (%p329) target = $region40
        $region39: #{tpu_custom_call.1} parent=11 // pred_region
          %s333 = ssub.s32 1024, 1024
          %334 = vsyncadd [#allocation6], %s333
          %s335 = sshll.u32 [#allocation7], 4
          %s336 = int_to_ptr.vmem [resolvable:$true] %s335
          %341 = dma.hbm_to_vmem [thread:$0]  %s7, 1024, %s336, [#allocation6], 64, 64, 4
        $region40: #{tpu_custom_call.1} parent=11 // pred_fallthru
          _
        // Predicated region
        $region41: #{tpu_custom_call.1} parent=11 // pred_check
          %p342 = pneg %p218
        $region42: #{tpu_custom_call.1} parent=11 // pred_check_branch
          %344 = sbr.rel (%p342) target = $region44
        $region43: #{tpu_custom_call.1} parent=11 // pred_region
          _
        $region44: #{tpu_custom_call.1} parent=11 // pred_fallthru
          _
        // Predicated region
        $region45: #{tpu_custom_call.1} parent=11 // pred_check
          %p345 = pneg %p239
        $region46: #{tpu_custom_call.1} parent=11 // pred_check_branch
          %347 = sbr.rel (%p345) target = $region48
        $region47: #{tpu_custom_call.1} parent=11 // pred_region
          _
        $region48: #{tpu_custom_call.1} parent=11 // pred_fallthru
          _
        // Predicated region
        $region49: #{tpu_custom_call.1} parent=11 // pred_check
          %p348 = pneg %p260
        $region50: #{tpu_custom_call.1} parent=11 // pred_check_branch
          %350 = sbr.rel (%p348) target = $region52
        $region51: #{tpu_custom_call.1} parent=11 // pred_region
          _
        $region52: #{tpu_custom_call.1} parent=11 // pred_fallthru
          _
      $region12: #{tpu_custom_call.1} parent=5 // pred_fallthru
        _
      %p351 = scmp.lt.s32.totalorder %s24, 2
      // Predicated region
      $region53: #{tpu_custom_call.1} parent=5 // pred_check
        %p352 = pneg %p351
      $region54: #{tpu_custom_call.1} parent=5 // pred_check_branch
        %354 = sbr.rel (%p352) target = $region56
      $region55: #{tpu_custom_call.1} parent=5 // pred_region
        // Predicated region
        $region57: #{tpu_custom_call.1} parent=55 // pred_check
          %p355 = pneg %p44
        $region58: #{tpu_custom_call.1} parent=55 // pred_check_branch
          %357 = sbr.rel (%p355) target = $region60
        $region59: #{tpu_custom_call.1} parent=55 // pred_region
          %s358 = sand.u32 %s34, 1
          %s359 = scalar_lea.sflag [#allocation3], %s358
          %s360 = sand.u32 %s34, 1
          %s361 = smul.addr %s360, 64
          %s362 = scalar_lea.vmem [#allocation2], %s361
          %s364 = ssub.s32 1024, 1024
          %365 = vsyncadd %s359, %s364
          %s366 = smul.addr %s24, 8
          %s367 = smul.addr %s366, 128
          %s368 = scalar_lea.hbm %s0, %s367
          %s369 = sshll.u32 %s362, 4
          %s370 = int_to_ptr.vmem [resolvable:$true] %s369
          %375 = dma.hbm_to_vmem [thread:$0]  %s368, 1024, %s370, %s359, 128, 128, 8
        $region60: #{tpu_custom_call.1} parent=55 // pred_fallthru
          _
      $region56: #{tpu_custom_call.1} parent=5 // pred_fallthru
        _
      %p376 = scmp.le.s32.totalorder 1, %s24
      %p377 = scmp.lt.s32.totalorder %s24, 3
      %p378 = pnand %p376, %p377
      %p379 = pneg %p378
      // Predicated region
      $region61: #{tpu_custom_call.1} parent=5 // pred_check
        _
      $region62: #{tpu_custom_call.1} parent=5 // pred_check_branch
        %381 = sbr.rel (%p378) target = $region64
      $region63: #{tpu_custom_call.1} parent=5 // pred_region
        %s382 = ssub.s32 %s24, 1
        %s383 = sand.u32 %s37, 1
        %s384 = scalar_lea.sflag [#allocation3], %s383
        %s385 = sand.u32 %s37, 1
        %s386 = smul.addr %s385, 64
        %s387 = scalar_lea.vmem [#allocation2], %s386
        // Predicated region
        $region65: #{tpu_custom_call.1} parent=63 // pred_check
          %p388 = pneg %p50
        $region66: #{tpu_custom_call.1} parent=63 // pred_check_branch
          %390 = sbr.rel (%p388) target = $region68
        $region67: #{tpu_custom_call.1} parent=63 // pred_region
          %391 = dma.done %s384, 1024
        $region68: #{tpu_custom_call.1} parent=63 // pred_fallthru
          _
        // Predicated region
        $region69: #{tpu_custom_call.1} parent=63 // pred_check
          %p392 = pneg %p71
        $region70: #{tpu_custom_call.1} parent=63 // pred_check_branch
          %394 = sbr.rel (%p392) target = $region72
        $region71: #{tpu_custom_call.1} parent=63 // pred_region
          %395 = dma.done [#allocation6], 1024
        $region72: #{tpu_custom_call.1} parent=63 // pred_fallthru
          _
        // Predicated region
        $region73: #{tpu_custom_call.1} parent=63 // pred_check
          %p396 = pneg %p197
        $region74: #{tpu_custom_call.1} parent=63 // pred_check_branch
          %398 = sbr.rel (%p396) target = $region76
        $region75: #{tpu_custom_call.1} parent=63 // pred_region
          %399 = dma.done [#allocation6], 1024
        $region76: #{tpu_custom_call.1} parent=63 // pred_fallthru
          _
        %s400 = sand.u32 %s37, 1
        %s401 = scalar_lea.sflag [#allocation3], %s400
        %s402 = sand.u32 %s37, 1
        %s403 = smul.addr %s402, 64
        %s404 = scalar_lea.vmem [#allocation2], %s403
        %p405 = pneg %p50
        %p406 = pneg %p47
        %p407 = pneg %p71
        %p408 = pneg %p68
        %p409 = pneg %p92
        %p410 = pneg %p89
        %p411 = pneg %p113
        %p412 = pneg %p110
        %p413 = pneg %p134
        %p414 = pneg %p131
        %p415 = pneg %p155
        %p416 = pneg %p152
        %p417 = pneg %p176
        %p418 = pneg %p173
        %p419 = pneg %p197
        %p420 = pneg %p194
        %p421 = pneg %p218
        %p422 = pneg %p215
        %p423 = pneg %p239
        %p424 = pneg %p236
        %p425 = pneg %p260
        %p426 = pneg %p257
        %p427 = pneg %p286
        %p428 = pneg %p283
        %s429 = sand.u32 %s273, 1
        %s430 = scalar_lea.sflag [#allocation4], %s429
        %s431 = sand.u32 %s273, 1
        %s432 = smul.addr %s431, 64
        %s433 = scalar_lea.vmem [#allocation8], %s432
        %v435 = vld [vmem:[%s387] sm:$0xff]
        %v436 = vld [vmem:[%s387 + $0x8] sm:$0xff]
        %v437 = vld [vmem:[%s387 + $0x10] sm:$0xff]
        %v438 = vld [vmem:[%s387 + $0x18] sm:$0xff]
        %v439 = vld [vmem:[%s387 + $0x20] sm:$0xff]
        %v440 = vld [vmem:[%s387 + $0x28] sm:$0xff]
        %v441 = vld [vmem:[%s387 + $0x30] sm:$0xff]
        %v442 = vld [vmem:[%s387 + $0x38] sm:$0xff]
        %v443 = vpack.c.bf16 %v436, %v435
        %v444 = vpack.c.bf16 %v438, %v437
        %v445 = vpack.c.bf16 %v440, %v439
        %v446 = vpack.c.bf16 %v442, %v441
        %v447 = vld [vmem:[#allocation5] sm:$0xf]
        %v448 = vld [vmem:[#allocation5 + $0x4] sm:$0xf]
        %v449 = vld [vmem:[#allocation5 + $0x8] sm:$0xf]
        %v450 = vld [vmem:[#allocation5 + $0xc] sm:$0xf]
        %v451 = vld [vmem:[#allocation5 + $0x10] sm:$0xf]
        %v452 = vld [vmem:[#allocation5 + $0x14] sm:$0xf]
        %v453 = vld [vmem:[#allocation5 + $0x18] sm:$0xf]
        %v454 = vld [vmem:[#allocation5 + $0x1c] sm:$0xf]
        %v455 = vld [vmem:[#allocation5 + $0x20] sm:$0xf]
        %v456 = vld [vmem:[#allocation5 + $0x24] sm:$0xf]
        %v457 = vld [vmem:[#allocation5 + $0x28] sm:$0xf]
        %v458 = vld [vmem:[#allocation5 + $0x2c] sm:$0xf]
        %v459 = vld [vmem:[#allocation5 + $0x30] sm:$0xf]
        %v460 = vld [vmem:[#allocation5 + $0x34] sm:$0xf]
        %v461 = vld [vmem:[#allocation5 + $0x38] sm:$0xf]
        %v462 = vld [vmem:[#allocation5 + $0x3c] sm:$0xf]
        %v479 = vunpack.c.l.b16 %v447
        %v480 = vunpack.c.l.b16 %v448
        %v481 = vunpack.c.l.b16 %v449
        %v482 = vunpack.c.l.b16 %v450
        %v483 = vunpack.c.l.b16 %v451
        %v484 = vunpack.c.l.b16 %v452
        %v485 = vunpack.c.l.b16 %v453
        %v486 = vunpack.c.l.b16 %v454
        %v487 = vunpack.c.l.b16 %v455
        %v488 = vunpack.c.l.b16 %v456
        %v489 = vunpack.c.l.b16 %v457
        %v490 = vunpack.c.l.b16 %v458
        %v491 = vunpack.c.l.b16 %v459
        %v492 = vunpack.c.l.b16 %v460
        %v493 = vunpack.c.l.b16 %v461
        %v494 = vunpack.c.l.b16 %v462
        %v495 = vpack.c.b16 %v480, %v479
        %v496 = vpack.c.b16 %v482, %v481
        %v497 = vpack.c.b16 %v484, %v483
        %v498 = vpack.c.b16 %v486, %v485
        %v499 = vpack.c.b16 %v488, %v487
        %v500 = vpack.c.b16 %v490, %v489
        %v501 = vpack.c.b16 %v492, %v491
        %v502 = vpack.c.b16 %v494, %v493
        %511 = vmatprep.subr.bf16.mxu0 0
        %512 = vmatpush1.bf16.msra.mxu0 %v495
        %513 = vmatprep.subr.bf16.mxu0 0
        %514 = vmatpush1.bf16.msra.mxu0 %v496
        %515 = vmatprep.subr.bf16.mxu0 0
        %516 = vmatpush1.bf16.msra.mxu0 %v497
        %517 = vmatprep.subr.bf16.mxu0 0
        %518 = vmatpush1.bf16.msra.mxu0 %v498
        %519 = vmatprep.subr.bf16.mxu0 0
        %520 = vmatpush1.bf16.msra.mxu0 %v499
        %521 = vmatprep.subr.bf16.mxu0 0
        %522 = vmatpush1.bf16.msra.mxu0 %v500
        %523 = vmatprep.subr.bf16.mxu0 0
        %524 = vmatpush1.bf16.msra.mxu0 %v501
        %525 = vmatprep.subr.bf16.mxu0 0
        %526 = vmatpush1.bf16.msra.mxu0 %v502
        %527 = vmatprep.subr.bf16.mxu0 0
        %528 = vmatpush1.bf16.msra.mxu0 0
        %529 = vmatprep.subr.bf16.mxu0 0
        %530 = vmatpush1.bf16.msra.mxu0 0
        %531 = vmatprep.subr.bf16.mxu0 0
        %532 = vmatpush1.bf16.msra.mxu0 0
        %533 = vmatprep.subr.bf16.mxu0 0
        %534 = vmatpush1.bf16.msra.mxu0 0
        %535 = vmatprep.subr.bf16.mxu0 0
        %536 = vmatpush1.bf16.msra.mxu0 0
        %537 = vmatprep.subr.bf16.mxu0 0
        %538 = vmatpush1.bf16.msra.mxu0 0
        %539 = vmatprep.subr.bf16.mxu0 0
        %540 = vmatpush1.bf16.msra.mxu0 0
        %541 = vmatprep.subr.bf16.mxu0 0
        %542 = vmatpush1.bf16.msra.mxu0 0
        %543 = vmatprep.mubr.bf16.mxu0 0
        %544 = vmatmul.mubr.bf16.gmra.mrb[0].mxu0 %v443
        %v545 = vpop.f32.mrb[0].mxu0
        %v546 = vadd.f32 0.0, %v545
        %v547 = vpop.f32.mrb[0].mxu0
        %v548 = vpop.f32.mrb[0].mxu0
        %v549 = vadd.f32 0.0, %v548
        %v550 = vpop.f32.mrb[0].mxu0
        %551 = vmatprep.mubr.bf16.mxu0 0
        %552 = vmatmul.mubr.bf16.gmra.mrb[0].mxu0 %v444
        %v553 = vpop.f32.mrb[0].mxu0
        %v554 = vadd.f32 0.0, %v553
        %v555 = vpop.f32.mrb[0].mxu0
        %v556 = vpop.f32.mrb[0].mxu0
        %v557 = vadd.f32 0.0, %v556
        %v558 = vpop.f32.mrb[0].mxu0
        %559 = vmatprep.mubr.bf16.mxu0 0
        %560 = vmatmul.mubr.bf16.gmra.mrb[0].mxu0 %v445
        %v561 = vpop.f32.mrb[0].mxu0
        %v562 = vadd.f32 0.0, %v561
        %v563 = vpop.f32.mrb[0].mxu0
        %v564 = vpop.f32.mrb[0].mxu0
        %v565 = vadd.f32 0.0, %v564
        %v566 = vpop.f32.mrb[0].mxu0
        %567 = vmatprep.mubr.bf16.mxu0 0
        %568 = vmatmul.mubr.bf16.gmra.mrb[0].mxu0 %v446
        %v569 = vpop.f32.mrb[0].mxu0
        %v570 = vadd.f32 0.0, %v569
        %v571 = vpop.f32.mrb[0].mxu0
        %v572 = vpop.f32.mrb[0].mxu0
        %v573 = vadd.f32 0.0, %v572
        %v574 = vpop.f32.mrb[0].mxu0
        %575 = vdwg.mxu0
        %v576 = vld [vmem:[%s2] sm:$0x1]
        %v578 = vlaneseq
        %v579 = vshrl.u32 %v578, 7
        %v580 = vsub.s32 0, %v579
        %v581 = vrot.slane %v576, %v580
        %v583 = vmul.f32 %v546, %v581
        %v584 = vmul.f32 %v549, %v581
        %v585 = vmul.f32 %v554, %v581
        %v586 = vmul.f32 %v557, %v581
        %v587 = vmul.f32 %v562, %v581
        %v588 = vmul.f32 %v565, %v581
        %v589 = vmul.f32 %v570, %v581
        %v590 = vmul.f32 %v573, %v581
        %v591 = vld [vmem:[%s3] sm:$0x1]
        %v593 = vlaneseq
        %v594 = vshrl.u32 %v593, 7
        %v595 = vsub.s32 0, %v594
        %v596 = vrot.slane %v591, %v595
        %v598 = vadd.f32 %v583, %v596
        %v599 = vadd.f32 %v584, %v596
        %v600 = vadd.f32 %v585, %v596
        %v601 = vadd.f32 %v586, %v596
        %v602 = vadd.f32 %v587, %v596
        %v603 = vadd.f32 %v588, %v596
        %v604 = vadd.f32 %v589, %v596
        %v605 = vadd.f32 %v590, %v596
        %v606 = vmax.f32 %v598, 0.0
        %v607 = vmax.f32 %v599, 0.0
        %v608 = vmax.f32 %v600, 0.0
        %v609 = vmax.f32 %v601, 0.0
        %v610 = vmax.f32 %v602, 0.0
        %v611 = vmax.f32 %v603, 0.0
        %v612 = vmax.f32 %v604, 0.0
        %v613 = vmax.f32 %v605, 0.0
        %v614 = vrot.slane %v606, 7
        %v615 = vrot.slane %v607, 7
        %v616 = vrot.slane %v608, 7
        %v617 = vrot.slane %v609, 7
        %v618 = vrot.slane %v610, 7
        %v619 = vrot.slane %v611, 7
        %v620 = vrot.slane %v612, 7
        %v621 = vrot.slane %v613, 7
        %v622 = vlaneseq
        %v623 = vshrl.u32 %v622, 7
        %vm624 = vcmp.lt.s32.totalorder %v623, 1
        %v625 = vsel %vm624, %v620, %v621
        %v626 = vsel %vm624, %v619, %v620
        %v627 = vsel %vm624, %v618, %v619
        %v628 = vsel %vm624, %v617, %v618
        %v629 = vsel %vm624, %v616, %v617
        %v630 = vsel %vm624, %v615, %v616
        %v631 = vsel %vm624, %v614, %v615
        %v632 = vsel %vm624, %v621, %v614
        %v633 = vld [vmem:[%s10] sm:$0xff]
        %v634 = vld [vmem:[%s10 + $0x8] sm:$0xff]
        %v635 = vld [vmem:[%s10 + $0x10] sm:$0xff]
        %v636 = vld [vmem:[%s10 + $0x18] sm:$0xff]
        %v637 = vld [vmem:[%s10 + $0x20] sm:$0xff]
        %v638 = vld [vmem:[%s10 + $0x28] sm:$0xff]
        %v639 = vld [vmem:[%s10 + $0x30] sm:$0xff]
        %v640 = vld [vmem:[%s10 + $0x38] sm:$0xff]
        %642 = vset.pattern.permute.xlu0 0
        %643 = vperm.xlu0 %642, %v633
        %v644 = vpop.permute.xlu0 %643
        %647 = vset.pattern.permute.xlu0 0
        %648 = vperm.xlu0 %647, %v634
        %v649 = vpop.permute.xlu0 %648
        %652 = vset.pattern.permute.xlu0 0
        %653 = vperm.xlu0 %652, %v635
        %v654 = vpop.permute.xlu0 %653
        %657 = vset.pattern.permute.xlu0 0
        %658 = vperm.xlu0 %657, %v636
        %v659 = vpop.permute.xlu0 %658
        %662 = vset.pattern.permute.xlu0 0
        %663 = vperm.xlu0 %662, %v637
        %v664 = vpop.permute.xlu0 %663
        %667 = vset.pattern.permute.xlu0 0
        %668 = vperm.xlu0 %667, %v638
        %v669 = vpop.permute.xlu0 %668
        %672 = vset.pattern.permute.xlu0 0
        %673 = vperm.xlu0 %672, %v639
        %v674 = vpop.permute.xlu0 %673
        %677 = vset.pattern.permute.xlu0 0
        %678 = vperm.xlu0 %677, %v640
        %v679 = vpop.permute.xlu0 %678
        %v681 = vmul.f32 %v625, %v644
        %v682 = vmul.f32 %v632, %v649
        %v683 = vmul.f32 %v631, %v654
        %v684 = vmul.f32 %v630, %v659
        %v685 = vmul.f32 %v629, %v664
        %v686 = vmul.f32 %v628, %v669
        %v687 = vmul.f32 %v627, %v674
        %v688 = vmul.f32 %v626, %v679
        %v689 = vpack.c.bf16 %v682, %v681
        %v690 = vpack.c.bf16 %v684, %v683
        %v691 = vpack.c.bf16 %v686, %v685
        %v692 = vpack.c.bf16 %v688, %v687
        %s693 = scalar_lea.vmem %s10, 64
        %v694 = vld [vmem:[%s693] sm:$0xff]
        %v695 = vld [vmem:[%s693 + $0x8] sm:$0xff]
        %v696 = vld [vmem:[%s693 + $0x10] sm:$0xff]
        %v697 = vld [vmem:[%s693 + $0x18] sm:$0xff]
        %v698 = vld [vmem:[%s693 + $0x20] sm:$0xff]
        %v699 = vld [vmem:[%s693 + $0x28] sm:$0xff]
        %v700 = vld [vmem:[%s693 + $0x30] sm:$0xff]
        %v701 = vld [vmem:[%s693 + $0x38] sm:$0xff]
        %703 = vset.pattern.permute.xlu0 0
        %704 = vperm.xlu0 %703, %v694
        %v705 = vpop.permute.xlu0 %704
        %708 = vset.pattern.permute.xlu0 0
        %709 = vperm.xlu0 %708, %v695
        %v710 = vpop.permute.xlu0 %709
        %713 = vset.pattern.permute.xlu0 0
        %714 = vperm.xlu0 %713, %v696
        %v715 = vpop.permute.xlu0 %714
        %718 = vset.pattern.permute.xlu0 0
        %719 = vperm.xlu0 %718, %v697
        %v720 = vpop.permute.xlu0 %719
        %723 = vset.pattern.permute.xlu0 0
        %724 = vperm.xlu0 %723, %v698
        %v725 = vpop.permute.xlu0 %724
        %728 = vset.pattern.permute.xlu0 0
        %729 = vperm.xlu0 %728, %v699
        %v730 = vpop.permute.xlu0 %729
        %733 = vset.pattern.permute.xlu0 0
        %734 = vperm.xlu0 %733, %v700
        %v735 = vpop.permute.xlu0 %734
        %738 = vset.pattern.permute.xlu0 0
        %739 = vperm.xlu0 %738, %v701
        %v740 = vpop.permute.xlu0 %739
        %v742 = vmul.f32 %v613, %v705
        %v743 = vmul.f32 %v606, %v710
        %v744 = vmul.f32 %v607, %v715
        %v745 = vmul.f32 %v608, %v720
        %v746 = vmul.f32 %v609, %v725
        %v747 = vmul.f32 %v610, %v730
        %v748 = vmul.f32 %v611, %v735
        %v749 = vmul.f32 %v612, %v740
        %v750 = vpack.c.bf16 %v743, %v742
        %v751 = vpack.c.bf16 %v745, %v744
        %v752 = vpack.c.bf16 %v747, %v746
        %v753 = vpack.c.bf16 %v749, %v748
        %v754 = vrot.slane %v606, 1
        %v755 = vrot.slane %v607, 1
        %v756 = vrot.slane %v608, 1
        %v757 = vrot.slane %v609, 1
        %v758 = vrot.slane %v610, 1
        %v759 = vrot.slane %v611, 1
        %v760 = vrot.slane %v612, 1
        %v761 = vrot.slane %v613, 1
        %vm762 = vcmp.lt.s32.totalorder %v623, 7
        %v763 = vsel %vm762, %v760, %v761
        %v764 = vsel %vm762, %v759, %v760
        %v765 = vsel %vm762, %v758, %v759
        %v766 = vsel %vm762, %v757, %v758
        %v767 = vsel %vm762, %v756, %v757
        %v768 = vsel %vm762, %v755, %v756
        %v769 = vsel %vm762, %v754, %v755
        %v770 = vsel %vm762, %v761, %v754
        %s771 = scalar_lea.vmem %s10, 128
        %v772 = vld [vmem:[%s771] sm:$0xff]
        %v773 = vld [vmem:[%s771 + $0x8] sm:$0xff]
        %v774 = vld [vmem:[%s771 + $0x10] sm:$0xff]
        %v775 = vld [vmem:[%s771 + $0x18] sm:$0xff]
        %v776 = vld [vmem:[%s771 + $0x20] sm:$0xff]
        %v777 = vld [vmem:[%s771 + $0x28] sm:$0xff]
        %v778 = vld [vmem:[%s771 + $0x30] sm:$0xff]
        %v779 = vld [vmem:[%s771 + $0x38] sm:$0xff]
        %781 = vset.pattern.permute.xlu0 0
        %782 = vperm.xlu0 %781, %v772
        %v783 = vpop.permute.xlu0 %782
        %786 = vset.pattern.permute.xlu0 0
        %787 = vperm.xlu0 %786, %v773
        %v788 = vpop.permute.xlu0 %787
        %791 = vset.pattern.permute.xlu0 0
        %792 = vperm.xlu0 %791, %v774
        %v793 = vpop.permute.xlu0 %792
        %796 = vset.pattern.permute.xlu0 0
        %797 = vperm.xlu0 %796, %v775
        %v798 = vpop.permute.xlu0 %797
        %801 = vset.pattern.permute.xlu0 0
        %802 = vperm.xlu0 %801, %v776
        %v803 = vpop.permute.xlu0 %802
        %806 = vset.pattern.permute.xlu0 0
        %807 = vperm.xlu0 %806, %v777
        %v808 = vpop.permute.xlu0 %807
        %811 = vset.pattern.permute.xlu0 0
        %812 = vperm.xlu0 %811, %v778
        %v813 = vpop.permute.xlu0 %812
        %816 = vset.pattern.permute.xlu0 0
        %817 = vperm.xlu0 %816, %v779
        %v818 = vpop.permute.xlu0 %817
        %v820 = vmul.f32 %v770, %v783
        %v821 = vmul.f32 %v769, %v788
        %v822 = vmul.f32 %v768, %v793
        %v823 = vmul.f32 %v767, %v798
        %v824 = vmul.f32 %v766, %v803
        %v825 = vmul.f32 %v765, %v808
        %v826 = vmul.f32 %v764, %v813
        %v827 = vmul.f32 %v763, %v818
        %v828 = vpack.c.bf16 %v821, %v820
        %v829 = vpack.c.bf16 %v823, %v822
        %v830 = vpack.c.bf16 %v825, %v824
        %v831 = vpack.c.bf16 %v827, %v826
        %s832 = scalar_lea.vmem %s10, 192
        %v833 = vld [vmem:[%s832] sm:$0xff]
        %v834 = vld [vmem:[%s832 + $0x8] sm:$0xff]
        %v835 = vld [vmem:[%s832 + $0x10] sm:$0xff]
        %v836 = vld [vmem:[%s832 + $0x18] sm:$0xff]
        %v837 = vld [vmem:[%s832 + $0x20] sm:$0xff]
        %v838 = vld [vmem:[%s832 + $0x28] sm:$0xff]
        %v839 = vld [vmem:[%s832 + $0x30] sm:$0xff]
        %v840 = vld [vmem:[%s832 + $0x38] sm:$0xff]
        %842 = vset.pattern.permute.xlu0 0
        %843 = vperm.xlu0 %842, %v833
        %v844 = vpop.permute.xlu0 %843
        %847 = vset.pattern.permute.xlu0 0
        %848 = vperm.xlu0 %847, %v834
        %v849 = vpop.permute.xlu0 %848
        %852 = vset.pattern.permute.xlu0 0
        %853 = vperm.xlu0 %852, %v835
        %v854 = vpop.permute.xlu0 %853
        %857 = vset.pattern.permute.xlu0 0
        %858 = vperm.xlu0 %857, %v836
        %v859 = vpop.permute.xlu0 %858
        %862 = vset.pattern.permute.xlu0 0
        %863 = vperm.xlu0 %862, %v837
        %v864 = vpop.permute.xlu0 %863
        %867 = vset.pattern.permute.xlu0 0
        %868 = vperm.xlu0 %867, %v838
        %v869 = vpop.permute.xlu0 %868
        %872 = vset.pattern.permute.xlu0 0
        %873 = vperm.xlu0 %872, %v839
        %v874 = vpop.permute.xlu0 %873
        %877 = vset.pattern.permute.xlu0 0
        %878 = vperm.xlu0 %877, %v840
        %v879 = vpop.permute.xlu0 %878
        %v881 = vmul.f32 %v632, %v844
        %v882 = vmul.f32 %v631, %v849
        %v883 = vmul.f32 %v630, %v854
        %v884 = vmul.f32 %v629, %v859
        %v885 = vmul.f32 %v628, %v864
        %v886 = vmul.f32 %v627, %v869
        %v887 = vmul.f32 %v626, %v874
        %v888 = vmul.f32 %v625, %v879
        %v889 = vpack.c.bf16 %v882, %v881
        %v890 = vpack.c.bf16 %v884, %v883
        %v891 = vpack.c.bf16 %v886, %v885
        %v892 = vpack.c.bf16 %v888, %v887
        %s893 = scalar_lea.vmem %s10, 256
        %v894 = vld [vmem:[%s893] sm:$0xff]
        %v895 = vld [vmem:[%s893 + $0x8] sm:$0xff]
        %v896 = vld [vmem:[%s893 + $0x10] sm:$0xff]
        %v897 = vld [vmem:[%s893 + $0x18] sm:$0xff]
        %v898 = vld [vmem:[%s893 + $0x20] sm:$0xff]
        %v899 = vld [vmem:[%s893 + $0x28] sm:$0xff]
        %v900 = vld [vmem:[%s893 + $0x30] sm:$0xff]
        %v901 = vld [vmem:[%s893 + $0x38] sm:$0xff]
        %903 = vset.pattern.permute.xlu0 0
        %904 = vperm.xlu0 %903, %v894
        %v905 = vpop.permute.xlu0 %904
        %908 = vset.pattern.permute.xlu0 0
        %909 = vperm.xlu0 %908, %v895
        %v910 = vpop.permute.xlu0 %909
        %913 = vset.pattern.permute.xlu0 0
        %914 = vperm.xlu0 %913, %v896
        %v915 = vpop.permute.xlu0 %914
        %918 = vset.pattern.permute.xlu0 0
        %919 = vperm.xlu0 %918, %v897
        %v920 = vpop.permute.xlu0 %919
        %923 = vset.pattern.permute.xlu0 0
        %924 = vperm.xlu0 %923, %v898
        %v925 = vpop.permute.xlu0 %924
        %928 = vset.pattern.permute.xlu0 0
        %929 = vperm.xlu0 %928, %v899
        %v930 = vpop.permute.xlu0 %929
        %933 = vset.pattern.permute.xlu0 0
        %934 = vperm.xlu0 %933, %v900
        %v935 = vpop.permute.xlu0 %934
        %938 = vset.pattern.permute.xlu0 0
        %939 = vperm.xlu0 %938, %v901
        %v940 = vpop.permute.xlu0 %939
        %v942 = vmul.f32 %v606, %v905
        %v943 = vmul.f32 %v607, %v910
        %v944 = vmul.f32 %v608, %v915
        %v945 = vmul.f32 %v609, %v920
        %v946 = vmul.f32 %v610, %v925
        %v947 = vmul.f32 %v611, %v930
        %v948 = vmul.f32 %v612, %v935
        %v949 = vmul.f32 %v613, %v940
        %v950 = vpack.c.bf16 %v943, %v942
        %v951 = vpack.c.bf16 %v945, %v944
        %v952 = vpack.c.bf16 %v947, %v946
        %v953 = vpack.c.bf16 %v949, %v948
        %s954 = scalar_lea.vmem %s10, 320
        %v955 = vld [vmem:[%s954] sm:$0xff]
        %v956 = vld [vmem:[%s954 + $0x8] sm:$0xff]
        %v957 = vld [vmem:[%s954 + $0x10] sm:$0xff]
        %v958 = vld [vmem:[%s954 + $0x18] sm:$0xff]
        %v959 = vld [vmem:[%s954 + $0x20] sm:$0xff]
        %v960 = vld [vmem:[%s954 + $0x28] sm:$0xff]
        %v961 = vld [vmem:[%s954 + $0x30] sm:$0xff]
        %v962 = vld [vmem:[%s954 + $0x38] sm:$0xff]
        %964 = vset.pattern.permute.xlu0 0
        %965 = vperm.xlu0 %964, %v955
        %v966 = vpop.permute.xlu0 %965
        %969 = vset.pattern.permute.xlu0 0
        %970 = vperm.xlu0 %969, %v956
        %v971 = vpop.permute.xlu0 %970
        %974 = vset.pattern.permute.xlu0 0
        %975 = vperm.xlu0 %974, %v957
        %v976 = vpop.permute.xlu0 %975
        %979 = vset.pattern.permute.xlu0 0
        %980 = vperm.xlu0 %979, %v958
        %v981 = vpop.permute.xlu0 %980
        %984 = vset.pattern.permute.xlu0 0
        %985 = vperm.xlu0 %984, %v959
        %v986 = vpop.permute.xlu0 %985
        %989 = vset.pattern.permute.xlu0 0
        %990 = vperm.xlu0 %989, %v960
        %v991 = vpop.permute.xlu0 %990
        %994 = vset.pattern.permute.xlu0 0
        %995 = vperm.xlu0 %994, %v961
        %v996 = vpop.permute.xlu0 %995
        %999 = vset.pattern.permute.xlu0 0
        %1000 = vperm.xlu0 %999, %v962
        %v1001 = vpop.permute.xlu0 %1000
        %v1003 = vmul.f32 %v769, %v966
        %v1004 = vmul.f32 %v768, %v971
        %v1005 = vmul.f32 %v767, %v976
        %v1006 = vmul.f32 %v766, %v981
        %v1007 = vmul.f32 %v765, %v986
        %v1008 = vmul.f32 %v764, %v991
        %v1009 = vmul.f32 %v763, %v996
        %v1010 = vmul.f32 %v770, %v1001
        %v1011 = vpack.c.bf16 %v1004, %v1003
        %v1012 = vpack.c.bf16 %v1006, %v1005
        %v1013 = vpack.c.bf16 %v1008, %v1007
        %v1014 = vpack.c.bf16 %v1010, %v1009
        %s1015 = scalar_lea.vmem %s10, 384
        %v1016 = vld [vmem:[%s1015] sm:$0xff]
        %v1017 = vld [vmem:[%s1015 + $0x8] sm:$0xff]
        %v1018 = vld [vmem:[%s1015 + $0x10] sm:$0xff]
        %v1019 = vld [vmem:[%s1015 + $0x18] sm:$0xff]
        %v1020 = vld [vmem:[%s1015 + $0x20] sm:$0xff]
        %v1021 = vld [vmem:[%s1015 + $0x28] sm:$0xff]
        %v1022 = vld [vmem:[%s1015 + $0x30] sm:$0xff]
        %v1023 = vld [vmem:[%s1015 + $0x38] sm:$0xff]
        %1025 = vset.pattern.permute.xlu0 0
        %1026 = vperm.xlu0 %1025, %v1016
        %v1027 = vpop.permute.xlu0 %1026
        %1030 = vset.pattern.permute.xlu0 0
        %1031 = vperm.xlu0 %1030, %v1017
        %v1032 = vpop.permute.xlu0 %1031
        %1035 = vset.pattern.permute.xlu0 0
        %1036 = vperm.xlu0 %1035, %v1018
        %v1037 = vpop.permute.xlu0 %1036
        %1040 = vset.pattern.permute.xlu0 0
        %1041 = vperm.xlu0 %1040, %v1019
        %v1042 = vpop.permute.xlu0 %1041
        %1045 = vset.pattern.permute.xlu0 0
        %1046 = vperm.xlu0 %1045, %v1020
        %v1047 = vpop.permute.xlu0 %1046
        %1050 = vset.pattern.permute.xlu0 0
        %1051 = vperm.xlu0 %1050, %v1021
        %v1052 = vpop.permute.xlu0 %1051
        %1055 = vset.pattern.permute.xlu0 0
        %1056 = vperm.xlu0 %1055, %v1022
        %v1057 = vpop.permute.xlu0 %1056
        %1060 = vset.pattern.permute.xlu0 0
        %1061 = vperm.xlu0 %1060, %v1023
        %v1062 = vpop.permute.xlu0 %1061
        %v1064 = vmul.f32 %v631, %v1027
        %v1065 = vmul.f32 %v630, %v1032
        %v1066 = vmul.f32 %v629, %v1037
        %v1067 = vmul.f32 %v628, %v1042
        %v1068 = vmul.f32 %v627, %v1047
        %v1069 = vmul.f32 %v626, %v1052
        %v1070 = vmul.f32 %v625, %v1057
        %v1071 = vmul.f32 %v632, %v1062
        %v1072 = vpack.c.bf16 %v1065, %v1064
        %v1073 = vpack.c.bf16 %v1067, %v1066
        %v1074 = vpack.c.bf16 %v1069, %v1068
        %v1075 = vpack.c.bf16 %v1071, %v1070
        %s1076 = scalar_lea.vmem %s10, 448
        %v1077 = vld [vmem:[%s1076] sm:$0xff]
        %v1078 = vld [vmem:[%s1076 + $0x8] sm:$0xff]
        %v1079 = vld [vmem:[%s1076 + $0x10] sm:$0xff]
        %v1080 = vld [vmem:[%s1076 + $0x18] sm:$0xff]
        %v1081 = vld [vmem:[%s1076 + $0x20] sm:$0xff]
        %v1082 = vld [vmem:[%s1076 + $0x28] sm:$0xff]
        %v1083 = vld [vmem:[%s1076 + $0x30] sm:$0xff]
        %v1084 = vld [vmem:[%s1076 + $0x38] sm:$0xff]
        %1086 = vset.pattern.permute.xlu0 0
        %1087 = vperm.xlu0 %1086, %v1077
        %v1088 = vpop.permute.xlu0 %1087
        %1091 = vset.pattern.permute.xlu0 0
        %1092 = vperm.xlu0 %1091, %v1078
        %v1093 = vpop.permute.xlu0 %1092
        %1096 = vset.pattern.permute.xlu0 0
        %1097 = vperm.xlu0 %1096, %v1079
        %v1098 = vpop.permute.xlu0 %1097
        %1101 = vset.pattern.permute.xlu0 0
        %1102 = vperm.xlu0 %1101, %v1080
        %v1103 = vpop.permute.xlu0 %1102
        %1106 = vset.pattern.permute.xlu0 0
        %1107 = vperm.xlu0 %1106, %v1081
        %v1108 = vpop.permute.xlu0 %1107
        %1111 = vset.pattern.permute.xlu0 0
        %1112 = vperm.xlu0 %1111, %v1082
        %v1113 = vpop.permute.xlu0 %1112
        %1116 = vset.pattern.permute.xlu0 0
        %1117 = vperm.xlu0 %1116, %v1083
        %v1118 = vpop.permute.xlu0 %1117
        %1121 = vset.pattern.permute.xlu0 0
        %1122 = vperm.xlu0 %1121, %v1084
        %v1123 = vpop.permute.xlu0 %1122
        %v1125 = vmul.f32 %v607, %v1088
        %v1126 = vmul.f32 %v608, %v1093
        %v1127 = vmul.f32 %v609, %v1098
        %v1128 = vmul.f32 %v610, %v1103
        %v1129 = vmul.f32 %v611, %v1108
        %v1130 = vmul.f32 %v612, %v1113
        %v1131 = vmul.f32 %v613, %v1118
        %v1132 = vmul.f32 %v606, %v1123
        %v1133 = vpack.c.bf16 %v1126, %v1125
        %v1134 = vpack.c.bf16 %v1128, %v1127
        %v1135 = vpack.c.bf16 %v1130, %v1129
        %v1136 = vpack.c.bf16 %v1132, %v1131
        %s1137 = scalar_lea.vmem %s10, 512
        %v1138 = vld [vmem:[%s1137] sm:$0xff]
        %v1139 = vld [vmem:[%s1137 + $0x8] sm:$0xff]
        %v1140 = vld [vmem:[%s1137 + $0x10] sm:$0xff]
        %v1141 = vld [vmem:[%s1137 + $0x18] sm:$0xff]
        %v1142 = vld [vmem:[%s1137 + $0x20] sm:$0xff]
        %v1143 = vld [vmem:[%s1137 + $0x28] sm:$0xff]
        %v1144 = vld [vmem:[%s1137 + $0x30] sm:$0xff]
        %v1145 = vld [vmem:[%s1137 + $0x38] sm:$0xff]
        %1147 = vset.pattern.permute.xlu0 0
        %1148 = vperm.xlu0 %1147, %v1138
        %v1149 = vpop.permute.xlu0 %1148
        %1152 = vset.pattern.permute.xlu0 0
        %1153 = vperm.xlu0 %1152, %v1139
        %v1154 = vpop.permute.xlu0 %1153
        %1157 = vset.pattern.permute.xlu0 0
        %1158 = vperm.xlu0 %1157, %v1140
        %v1159 = vpop.permute.xlu0 %1158
        %1162 = vset.pattern.permute.xlu0 0
        %1163 = vperm.xlu0 %1162, %v1141
        %v1164 = vpop.permute.xlu0 %1163
        %1167 = vset.pattern.permute.xlu0 0
        %1168 = vperm.xlu0 %1167, %v1142
        %v1169 = vpop.permute.xlu0 %1168
        %1172 = vset.pattern.permute.xlu0 0
        %1173 = vperm.xlu0 %1172, %v1143
        %v1174 = vpop.permute.xlu0 %1173
        %1177 = vset.pattern.permute.xlu0 0
        %1178 = vperm.xlu0 %1177, %v1144
        %v1179 = vpop.permute.xlu0 %1178
        %1182 = vset.pattern.permute.xlu0 0
        %1183 = vperm.xlu0 %1182, %v1145
        %v1184 = vpop.permute.xlu0 %1183
        %v1186 = vmul.f32 %v768, %v1149
        %v1187 = vmul.f32 %v767, %v1154
        %v1188 = vmul.f32 %v766, %v1159
        %v1189 = vmul.f32 %v765, %v1164
        %v1190 = vmul.f32 %v764, %v1169
        %v1191 = vmul.f32 %v763, %v1174
        %v1192 = vmul.f32 %v770, %v1179
        %v1193 = vmul.f32 %v769, %v1184
        %v1194 = vpack.c.bf16 %v1187, %v1186
        %v1195 = vpack.c.bf16 %v1189, %v1188
        %v1196 = vpack.c.bf16 %v1191, %v1190
        %v1197 = vpack.c.bf16 %v1193, %v1192
        %v1198 = vld [vmem:[%s4] sm:$0xf]
        %v1199 = vld [vmem:[%s4 + $0x4] sm:$0xf]
        %v1200 = vld [vmem:[%s4 + $0x8] sm:$0xf]
        %v1201 = vld [vmem:[%s4 + $0xc] sm:$0xf]
        %v1202 = vld [vmem:[%s4 + $0x10] sm:$0xf]
        %v1203 = vld [vmem:[%s4 + $0x14] sm:$0xf]
        %v1204 = vld [vmem:[%s4 + $0x18] sm:$0xf]
        %v1205 = vld [vmem:[%s4 + $0x1c] sm:$0xf]
        %v1206 = vld [vmem:[%s4 + $0x20] sm:$0xf]
        %v1207 = vld [vmem:[%s4 + $0x24] sm:$0xf]
        %v1208 = vld [vmem:[%s4 + $0x28] sm:$0xf]
        %v1209 = vld [vmem:[%s4 + $0x2c] sm:$0xf]
        %v1210 = vld [vmem:[%s4 + $0x30] sm:$0xf]
        %v1211 = vld [vmem:[%s4 + $0x34] sm:$0xf]
        %v1212 = vld [vmem:[%s4 + $0x38] sm:$0xf]
        %v1213 = vld [vmem:[%s4 + $0x3c] sm:$0xf]
        %v1214 = vld [vmem:[%s4 + $0x40] sm:$0xf]
        %v1215 = vld [vmem:[%s4 + $0x44] sm:$0xf]
        %v1216 = vld [vmem:[%s4 + $0x48] sm:$0xf]
        %v1217 = vld [vmem:[%s4 + $0x4c] sm:$0xf]
        %v1218 = vld [vmem:[%s4 + $0x50] sm:$0xf]
        %v1219 = vld [vmem:[%s4 + $0x54] sm:$0xf]
        %v1220 = vld [vmem:[%s4 + $0x58] sm:$0xf]
        %v1221 = vld [vmem:[%s4 + $0x5c] sm:$0xf]
        %v1222 = vld [vmem:[%s4 + $0x60] sm:$0xf]
        %v1223 = vld [vmem:[%s4 + $0x64] sm:$0xf]
        %v1224 = vld [vmem:[%s4 + $0x68] sm:$0xf]
        %v1225 = vld [vmem:[%s4 + $0x6c] sm:$0xf]
        %v1226 = vld [vmem:[%s4 + $0x70] sm:$0xf]
        %v1227 = vld [vmem:[%s4 + $0x74] sm:$0xf]
        %v1228 = vld [vmem:[%s4 + $0x78] sm:$0xf]
        %v1229 = vld [vmem:[%s4 + $0x7c] sm:$0xf]
        %v1230 = vld [vmem:[%s4 + $0x80] sm:$0xf]
        %v1231 = vld [vmem:[%s4 + $0x84] sm:$0xf]
        %v1232 = vld [vmem:[%s4 + $0x88] sm:$0xf]
        %v1233 = vld [vmem:[%s4 + $0x8c] sm:$0xf]
        %v1234 = vld [vmem:[%s4 + $0x90] sm:$0xf]
        %v1235 = vld [vmem:[%s4 + $0x94] sm:$0xf]
        %v1236 = vld [vmem:[%s4 + $0x98] sm:$0xf]
        %v1237 = vld [vmem:[%s4 + $0x9c] sm:$0xf]
        %v1238 = vld [vmem:[%s4 + $0xa0] sm:$0xf]
        %v1239 = vld [vmem:[%s4 + $0xa4] sm:$0xf]
        %v1240 = vld [vmem:[%s4 + $0xa8] sm:$0xf]
        %v1241 = vld [vmem:[%s4 + $0xac] sm:$0xf]
        %v1242 = vld [vmem:[%s4 + $0xb0] sm:$0xf]
        %v1243 = vld [vmem:[%s4 + $0xb4] sm:$0xf]
        %v1244 = vld [vmem:[%s4 + $0xb8] sm:$0xf]
        %v1245 = vld [vmem:[%s4 + $0xbc] sm:$0xf]
        %v1246 = vld [vmem:[%s4 + $0xc0] sm:$0xf]
        %v1247 = vld [vmem:[%s4 + $0xc4] sm:$0xf]
        %v1248 = vld [vmem:[%s4 + $0xc8] sm:$0xf]
        %v1249 = vld [vmem:[%s4 + $0xcc] sm:$0xf]
        %v1250 = vld [vmem:[%s4 + $0xd0] sm:$0xf]
        %v1251 = vld [vmem:[%s4 + $0xd4] sm:$0xf]
        %v1252 = vld [vmem:[%s4 + $0xd8] sm:$0xf]
        %v1253 = vld [vmem:[%s4 + $0xdc] sm:$0xf]
        %v1254 = vld [vmem:[%s4 + $0xe0] sm:$0xf]
        %v1255 = vld [vmem:[%s4 + $0xe4] sm:$0xf]
        %v1256 = vld [vmem:[%s4 + $0xe8] sm:$0xf]
        %v1257 = vld [vmem:[%s4 + $0xec] sm:$0xf]
        %v1258 = vld [vmem:[%s4 + $0xf0] sm:$0xf]
        %v1259 = vld [vmem:[%s4 + $0xf4] sm:$0xf]
        %v1260 = vld [vmem:[%s4 + $0xf8] sm:$0xf]
        %v1261 = vld [vmem:[%s4 + $0xfc] sm:$0xf]
        %v1262 = vld [vmem:[%s4 + $0x100] sm:$0xf]
        %v1263 = vld [vmem:[%s4 + $0x104] sm:$0xf]
        %v1264 = vld [vmem:[%s4 + $0x108] sm:$0xf]
        %v1265 = vld [vmem:[%s4 + $0x10c] sm:$0xf]
        %v1266 = vld [vmem:[%s4 + $0x110] sm:$0xf]
        %v1267 = vld [vmem:[%s4 + $0x114] sm:$0xf]
        %v1268 = vld [vmem:[%s4 + $0x118] sm:$0xf]
        %v1269 = vld [vmem:[%s4 + $0x11c] sm:$0xf]
        %v1270 = vld [vmem:[%s4 + $0x120] sm:$0xf]
        %v1271 = vld [vmem:[%s4 + $0x124] sm:$0xf]
        %v1272 = vld [vmem:[%s4 + $0x128] sm:$0xf]
        %v1273 = vld [vmem:[%s4 + $0x12c] sm:$0xf]
        %v1274 = vld [vmem:[%s4 + $0x130] sm:$0xf]
        %v1275 = vld [vmem:[%s4 + $0x134] sm:$0xf]
        %v1276 = vld [vmem:[%s4 + $0x138] sm:$0xf]
        %v1277 = vld [vmem:[%s4 + $0x13c] sm:$0xf]
        %v1278 = vld [vmem:[%s4 + $0x140] sm:$0xf]
        %v1279 = vld [vmem:[%s4 + $0x144] sm:$0xf]
        %v1280 = vld [vmem:[%s4 + $0x148] sm:$0xf]
        %v1281 = vld [vmem:[%s4 + $0x14c] sm:$0xf]
        %v1282 = vld [vmem:[%s4 + $0x150] sm:$0xf]
        %v1283 = vld [vmem:[%s4 + $0x154] sm:$0xf]
        %v1284 = vld [vmem:[%s4 + $0x158] sm:$0xf]
        %v1285 = vld [vmem:[%s4 + $0x15c] sm:$0xf]
        %v1286 = vld [vmem:[%s4 + $0x160] sm:$0xf]
        %v1287 = vld [vmem:[%s4 + $0x164] sm:$0xf]
        %v1288 = vld [vmem:[%s4 + $0x168] sm:$0xf]
        %v1289 = vld [vmem:[%s4 + $0x16c] sm:$0xf]
        %v1290 = vld [vmem:[%s4 + $0x170] sm:$0xf]
        %v1291 = vld [vmem:[%s4 + $0x174] sm:$0xf]
        %v1292 = vld [vmem:[%s4 + $0x178] sm:$0xf]
        %v1293 = vld [vmem:[%s4 + $0x17c] sm:$0xf]
        %v1294 = vld [vmem:[%s4 + $0x180] sm:$0xf]
        %v1295 = vld [vmem:[%s4 + $0x184] sm:$0xf]
        %v1296 = vld [vmem:[%s4 + $0x188] sm:$0xf]
        %v1297 = vld [vmem:[%s4 + $0x18c] sm:$0xf]
        %v1298 = vld [vmem:[%s4 + $0x190] sm:$0xf]
        %v1299 = vld [vmem:[%s4 + $0x194] sm:$0xf]
        %v1300 = vld [vmem:[%s4 + $0x198] sm:$0xf]
        %v1301 = vld [vmem:[%s4 + $0x19c] sm:$0xf]
        %v1302 = vld [vmem:[%s4 + $0x1a0] sm:$0xf]
        %v1303 = vld [vmem:[%s4 + $0x1a4] sm:$0xf]
        %v1304 = vld [vmem:[%s4 + $0x1a8] sm:$0xf]
        %v1305 = vld [vmem:[%s4 + $0x1ac] sm:$0xf]
        %v1306 = vld [vmem:[%s4 + $0x1b0] sm:$0xf]
        %v1307 = vld [vmem:[%s4 + $0x1b4] sm:$0xf]
        %v1308 = vld [vmem:[%s4 + $0x1b8] sm:$0xf]
        %v1309 = vld [vmem:[%s4 + $0x1bc] sm:$0xf]
        %v1310 = vld [vmem:[%s4 + $0x1c0] sm:$0xf]
        %v1311 = vld [vmem:[%s4 + $0x1c4] sm:$0xf]
        %v1312 = vld [vmem:[%s4 + $0x1c8] sm:$0xf]
        %v1313 = vld [vmem:[%s4 + $0x1cc] sm:$0xf]
        %v1314 = vld [vmem:[%s4 + $0x1d0] sm:$0xf]
        %v1315 = vld [vmem:[%s4 + $0x1d4] sm:$0xf]
        %v1316 = vld [vmem:[%s4 + $0x1d8] sm:$0xf]
        %v1317 = vld [vmem:[%s4 + $0x1dc] sm:$0xf]
        %v1318 = vld [vmem:[%s4 + $0x1e0] sm:$0xf]
        %v1319 = vld [vmem:[%s4 + $0x1e4] sm:$0xf]
        %v1320 = vld [vmem:[%s4 + $0x1e8] sm:$0xf]
        %v1321 = vld [vmem:[%s4 + $0x1ec] sm:$0xf]
        %v1322 = vld [vmem:[%s4 + $0x1f0] sm:$0xf]
        %v1323 = vld [vmem:[%s4 + $0x1f4] sm:$0xf]
        %v1324 = vld [vmem:[%s4 + $0x1f8] sm:$0xf]
        %v1325 = vld [vmem:[%s4 + $0x1fc] sm:$0xf]
        %v1326 = vld [vmem:[%s4 + $0x200] sm:$0xf]
        %v1327 = vld [vmem:[%s4 + $0x204] sm:$0xf]
        %v1328 = vld [vmem:[%s4 + $0x208] sm:$0xf]
        %v1329 = vld [vmem:[%s4 + $0x20c] sm:$0xf]
        %v1330 = vld [vmem:[%s4 + $0x210] sm:$0xf]
        %v1331 = vld [vmem:[%s4 + $0x214] sm:$0xf]
        %v1332 = vld [vmem:[%s4 + $0x218] sm:$0xf]
        %v1333 = vld [vmem:[%s4 + $0x21c] sm:$0xf]
        %v1334 = vld [vmem:[%s4 + $0x220] sm:$0xf]
        %v1335 = vld [vmem:[%s4 + $0x224] sm:$0xf]
        %v1336 = vld [vmem:[%s4 + $0x228] sm:$0xf]
        %v1337 = vld [vmem:[%s4 + $0x22c] sm:$0xf]
        %v1338 = vld [vmem:[%s4 + $0x230] sm:$0xf]
        %v1339 = vld [vmem:[%s4 + $0x234] sm:$0xf]
        %v1340 = vld [vmem:[%s4 + $0x238] sm:$0xf]
        %v1341 = vld [vmem:[%s4 + $0x23c] sm:$0xf]
        %v1486 = vunpack.c.l.b16 %v1198
        %v1487 = vunpack.c.l.b16 %v1199
        %v1488 = vunpack.c.l.b16 %v1200
        %v1489 = vunpack.c.l.b16 %v1201
        %v1490 = vunpack.c.l.b16 %v1202
        %v1491 = vunpack.c.l.b16 %v1203
        %v1492 = vunpack.c.l.b16 %v1204
        %v1493 = vunpack.c.l.b16 %v1205
        %v1494 = vunpack.c.l.b16 %v1206
        %v1495 = vunpack.c.l.b16 %v1207
        %v1496 = vunpack.c.l.b16 %v1208
        %v1497 = vunpack.c.l.b16 %v1209
        %v1498 = vunpack.c.l.b16 %v1210
        %v1499 = vunpack.c.l.b16 %v1211
        %v1500 = vunpack.c.l.b16 %v1212
        %v1501 = vunpack.c.l.b16 %v1213
        %v1502 = vunpack.c.l.b16 %v1214
        %v1503 = vunpack.c.l.b16 %v1215
        %v1504 = vunpack.c.l.b16 %v1216
        %v1505 = vunpack.c.l.b16 %v1217
        %v1506 = vunpack.c.l.b16 %v1218
        %v1507 = vunpack.c.l.b16 %v1219
        %v1508 = vunpack.c.l.b16 %v1220
        %v1509 = vunpack.c.l.b16 %v1221
        %v1510 = vunpack.c.l.b16 %v1222
        %v1511 = vunpack.c.l.b16 %v1223
        %v1512 = vunpack.c.l.b16 %v1224
        %v1513 = vunpack.c.l.b16 %v1225
        %v1514 = vunpack.c.l.b16 %v1226
        %v1515 = vunpack.c.l.b16 %v1227
        %v1516 = vunpack.c.l.b16 %v1228
        %v1517 = vunpack.c.l.b16 %v1229
        %v1518 = vunpack.c.l.b16 %v1230
        %v1519 = vunpack.c.l.b16 %v1231
        %v1520 = vunpack.c.l.b16 %v1232
        %v1521 = vunpack.c.l.b16 %v1233
        %v1522 = vunpack.c.l.b16 %v1234
        %v1523 = vunpack.c.l.b16 %v1235
        %v1524 = vunpack.c.l.b16 %v1236
        %v1525 = vunpack.c.l.b16 %v1237
        %v1526 = vunpack.c.l.b16 %v1238
        %v1527 = vunpack.c.l.b16 %v1239
        %v1528 = vunpack.c.l.b16 %v1240
        %v1529 = vunpack.c.l.b16 %v1241
        %v1530 = vunpack.c.l.b16 %v1242
        %v1531 = vunpack.c.l.b16 %v1243
        %v1532 = vunpack.c.l.b16 %v1244
        %v1533 = vunpack.c.l.b16 %v1245
        %v1534 = vunpack.c.l.b16 %v1246
        %v1535 = vunpack.c.l.b16 %v1247
        %v1536 = vunpack.c.l.b16 %v1248
        %v1537 = vunpack.c.l.b16 %v1249
        %v1538 = vunpack.c.l.b16 %v1250
        %v1539 = vunpack.c.l.b16 %v1251
        %v1540 = vunpack.c.l.b16 %v1252
        %v1541 = vunpack.c.l.b16 %v1253
        %v1542 = vunpack.c.l.b16 %v1254
        %v1543 = vunpack.c.l.b16 %v1255
        %v1544 = vunpack.c.l.b16 %v1256
        %v1545 = vunpack.c.l.b16 %v1257
        %v1546 = vunpack.c.l.b16 %v1258
        %v1547 = vunpack.c.l.b16 %v1259
        %v1548 = vunpack.c.l.b16 %v1260
        %v1549 = vunpack.c.l.b16 %v1261
        %v1550 = vunpack.c.l.b16 %v1262
        %v1551 = vunpack.c.l.b16 %v1263
        %v1552 = vunpack.c.l.b16 %v1264
        %v1553 = vunpack.c.l.b16 %v1265
        %v1554 = vunpack.c.l.b16 %v1266
        %v1555 = vunpack.c.l.b16 %v1267
        %v1556 = vunpack.c.l.b16 %v1268
        %v1557 = vunpack.c.l.b16 %v1269
        %v1558 = vunpack.c.l.b16 %v1270
        %v1559 = vunpack.c.l.b16 %v1271
        %v1560 = vunpack.c.l.b16 %v1272
        %v1561 = vunpack.c.l.b16 %v1273
        %v1562 = vunpack.c.l.b16 %v1274
        %v1563 = vunpack.c.l.b16 %v1275
        %v1564 = vunpack.c.l.b16 %v1276
        %v1565 = vunpack.c.l.b16 %v1277
        %v1566 = vunpack.c.l.b16 %v1278
        %v1567 = vunpack.c.l.b16 %v1279
        %v1568 = vunpack.c.l.b16 %v1280
        %v1569 = vunpack.c.l.b16 %v1281
        %v1570 = vunpack.c.l.b16 %v1282
        %v1571 = vunpack.c.l.b16 %v1283
        %v1572 = vunpack.c.l.b16 %v1284
        %v1573 = vunpack.c.l.b16 %v1285
        %v1574 = vunpack.c.l.b16 %v1286
        %v1575 = vunpack.c.l.b16 %v1287
        %v1576 = vunpack.c.l.b16 %v1288
        %v1577 = vunpack.c.l.b16 %v1289
        %v1578 = vunpack.c.l.b16 %v1290
        %v1579 = vunpack.c.l.b16 %v1291
        %v1580 = vunpack.c.l.b16 %v1292
        %v1581 = vunpack.c.l.b16 %v1293
        %v1582 = vunpack.c.l.b16 %v1294
        %v1583 = vunpack.c.l.b16 %v1295
        %v1584 = vunpack.c.l.b16 %v1296
        %v1585 = vunpack.c.l.b16 %v1297
        %v1586 = vunpack.c.l.b16 %v1298
        %v1587 = vunpack.c.l.b16 %v1299
        %v1588 = vunpack.c.l.b16 %v1300
        %v1589 = vunpack.c.l.b16 %v1301
        %v1590 = vunpack.c.l.b16 %v1302
        %v1591 = vunpack.c.l.b16 %v1303
        %v1592 = vunpack.c.l.b16 %v1304
        %v1593 = vunpack.c.l.b16 %v1305
        %v1594 = vunpack.c.l.b16 %v1306
        %v1595 = vunpack.c.l.b16 %v1307
        %v1596 = vunpack.c.l.b16 %v1308
        %v1597 = vunpack.c.l.b16 %v1309
        %v1598 = vunpack.c.l.b16 %v1310
        %v1599 = vunpack.c.l.b16 %v1311
        %v1600 = vunpack.c.l.b16 %v1312
        %v1601 = vunpack.c.l.b16 %v1313
        %v1602 = vunpack.c.l.b16 %v1314
        %v1603 = vunpack.c.l.b16 %v1315
        %v1604 = vunpack.c.l.b16 %v1316
        %v1605 = vunpack.c.l.b16 %v1317
        %v1606 = vunpack.c.l.b16 %v1318
        %v1607 = vunpack.c.l.b16 %v1319
        %v1608 = vunpack.c.l.b16 %v1320
        %v1609 = vunpack.c.l.b16 %v1321
        %v1610 = vunpack.c.l.b16 %v1322
        %v1611 = vunpack.c.l.b16 %v1323
        %v1612 = vunpack.c.l.b16 %v1324
        %v1613 = vunpack.c.l.b16 %v1325
        %v1614 = vunpack.c.l.b16 %v1326
        %v1615 = vunpack.c.l.b16 %v1327
        %v1616 = vunpack.c.l.b16 %v1328
        %v1617 = vunpack.c.l.b16 %v1329
        %v1618 = vunpack.c.l.b16 %v1330
        %v1619 = vunpack.c.l.b16 %v1331
        %v1620 = vunpack.c.l.b16 %v1332
        %v1621 = vunpack.c.l.b16 %v1333
        %v1622 = vunpack.c.l.b16 %v1334
        %v1623 = vunpack.c.l.b16 %v1335
        %v1624 = vunpack.c.l.b16 %v1336
        %v1625 = vunpack.c.l.b16 %v1337
        %v1626 = vunpack.c.l.b16 %v1338
        %v1627 = vunpack.c.l.b16 %v1339
        %v1628 = vunpack.c.l.b16 %v1340
        %v1629 = vunpack.c.l.b16 %v1341
        %v1630 = vpack.c.b16 %v1487, %v1486
        %v1631 = vpack.c.b16 %v1489, %v1488
        %v1632 = vpack.c.b16 %v1491, %v1490
        %v1633 = vpack.c.b16 %v1493, %v1492
        %v1634 = vpack.c.b16 %v1495, %v1494
        %v1635 = vpack.c.b16 %v1497, %v1496
        %v1636 = vpack.c.b16 %v1499, %v1498
        %v1637 = vpack.c.b16 %v1501, %v1500
        %v1638 = vpack.c.b16 %v1503, %v1502
        %v1639 = vpack.c.b16 %v1505, %v1504
        %v1640 = vpack.c.b16 %v1507, %v1506
        %v1641 = vpack.c.b16 %v1509, %v1508
        %v1642 = vpack.c.b16 %v1511, %v1510
        %v1643 = vpack.c.b16 %v1513, %v1512
        %v1644 = vpack.c.b16 %v1515, %v1514
        %v1645 = vpack.c.b16 %v1517, %v1516
        %v1646 = vpack.c.b16 %v1519, %v1518
        %v1647 = vpack.c.b16 %v1521, %v1520
        %v1648 = vpack.c.b16 %v1523, %v1522
        %v1649 = vpack.c.b16 %v1525, %v1524
        %v1650 = vpack.c.b16 %v1527, %v1526
        %v1651 = vpack.c.b16 %v1529, %v1528
        %v1652 = vpack.c.b16 %v1531, %v1530
        %v1653 = vpack.c.b16 %v1533, %v1532
        %v1654 = vpack.c.b16 %v1535, %v1534
        %v1655 = vpack.c.b16 %v1537, %v1536
        %v1656 = vpack.c.b16 %v1539, %v1538
        %v1657 = vpack.c.b16 %v1541, %v1540
        %v1658 = vpack.c.b16 %v1543, %v1542
        %v1659 = vpack.c.b16 %v1545, %v1544
        %v1660 = vpack.c.b16 %v1547, %v1546
        %v1661 = vpack.c.b16 %v1549, %v1548
        %v1662 = vpack.c.b16 %v1551, %v1550
        %v1663 = vpack.c.b16 %v1553, %v1552
        %v1664 = vpack.c.b16 %v1555, %v1554
        %v1665 = vpack.c.b16 %v1557, %v1556
        %v1666 = vpack.c.b16 %v1559, %v1558
        %v1667 = vpack.c.b16 %v1561, %v1560
        %v1668 = vpack.c.b16 %v1563, %v1562
        %v1669 = vpack.c.b16 %v1565, %v1564
        %v1670 = vpack.c.b16 %v1567, %v1566
        %v1671 = vpack.c.b16 %v1569, %v1568
        %v1672 = vpack.c.b16 %v1571, %v1570
        %v1673 = vpack.c.b16 %v1573, %v1572
        %v1674 = vpack.c.b16 %v1575, %v1574
        %v1675 = vpack.c.b16 %v1577, %v1576
        %v1676 = vpack.c.b16 %v1579, %v1578
        %v1677 = vpack.c.b16 %v1581, %v1580
        %v1678 = vpack.c.b16 %v1583, %v1582
        %v1679 = vpack.c.b16 %v1585, %v1584
        %v1680 = vpack.c.b16 %v1587, %v1586
        %v1681 = vpack.c.b16 %v1589, %v1588
        %v1682 = vpack.c.b16 %v1591, %v1590
        %v1683 = vpack.c.b16 %v1593, %v1592
        %v1684 = vpack.c.b16 %v1595, %v1594
        %v1685 = vpack.c.b16 %v1597, %v1596
        %v1686 = vpack.c.b16 %v1599, %v1598
        %v1687 = vpack.c.b16 %v1601, %v1600
        %v1688 = vpack.c.b16 %v1603, %v1602
        %v1689 = vpack.c.b16 %v1605, %v1604
        %v1690 = vpack.c.b16 %v1607, %v1606
        %v1691 = vpack.c.b16 %v1609, %v1608
        %v1692 = vpack.c.b16 %v1611, %v1610
        %v1693 = vpack.c.b16 %v1613, %v1612
        %v1694 = vpack.c.b16 %v1615, %v1614
        %v1695 = vpack.c.b16 %v1617, %v1616
        %v1696 = vpack.c.b16 %v1619, %v1618
        %v1697 = vpack.c.b16 %v1621, %v1620
        %v1698 = vpack.c.b16 %v1623, %v1622
        %v1699 = vpack.c.b16 %v1625, %v1624
        %v1700 = vpack.c.b16 %v1627, %v1626
        %v1701 = vpack.c.b16 %v1629, %v1628
        %1774 = vmatprep.subr.bf16.mxu0 0
        %1775 = vmatpush1.bf16.msra.mxu0 %v1630
        %1776 = vmatprep.subr.bf16.mxu0 0
        %1777 = vmatpush1.bf16.msra.mxu0 %v1631
        %1778 = vmatprep.subr.bf16.mxu0 0
        %1779 = vmatpush1.bf16.msra.mxu0 %v1632
        %1780 = vmatprep.subr.bf16.mxu0 0
        %1781 = vmatpush1.bf16.msra.mxu0 %v1633
        %1782 = vmatprep.subr.bf16.mxu0 0
        %1783 = vmatpush1.bf16.msra.mxu0 %v1634
        %1784 = vmatprep.subr.bf16.mxu0 0
        %1785 = vmatpush1.bf16.msra.mxu0 %v1635
        %1786 = vmatprep.subr.bf16.mxu0 0
        %1787 = vmatpush1.bf16.msra.mxu0 %v1636
        %1788 = vmatprep.subr.bf16.mxu0 0
        %1789 = vmatpush1.bf16.msra.mxu0 %v1637
        %1790 = vmatprep.subr.bf16.mxu0 0
        %1791 = vmatpush1.bf16.msra.mxu0 %v1638
        %1792 = vmatprep.subr.bf16.mxu0 0
        %1793 = vmatpush1.bf16.msra.mxu0 %v1639
        %1794 = vmatprep.subr.bf16.mxu0 0
        %1795 = vmatpush1.bf16.msra.mxu0 %v1640
        %1796 = vmatprep.subr.bf16.mxu0 0
        %1797 = vmatpush1.bf16.msra.mxu0 %v1641
        %1798 = vmatprep.subr.bf16.mxu0 0
        %1799 = vmatpush1.bf16.msra.mxu0 %v1642
        %1800 = vmatprep.subr.bf16.mxu0 0
        %1801 = vmatpush1.bf16.msra.mxu0 %v1643
        %1802 = vmatprep.subr.bf16.mxu0 0
        %1803 = vmatpush1.bf16.msra.mxu0 %v1644
        %1804 = vmatprep.subr.bf16.mxu0 0
        %1805 = vmatpush1.bf16.msra.mxu0 %v1645
        %1806 = vmatprep.mubr.bf16.mxu0 %v750
        %1807 = vmatmul.mubr.bf16.gmra.mrb[0].mxu0 %v689
        %v1808 = vpop.f32.mrb[0].mxu0
        %v1809 = vadd.f32 0.0, %v1808
        %v1810 = vpop.f32.mrb[0].mxu0
        %v1811 = vpop.f32.mrb[0].mxu0
        %v1812 = vadd.f32 0.0, %v1811
        %v1813 = vpop.f32.mrb[0].mxu0
        %1814 = vmatprep.mubr.bf16.mxu0 %v751
        %1815 = vmatmul.mubr.bf16.gmra.mrb[0].mxu0 %v690
        %v1816 = vpop.f32.mrb[0].mxu0
        %v1817 = vadd.f32 0.0, %v1816
        %v1818 = vpop.f32.mrb[0].mxu0
        %v1819 = vpop.f32.mrb[0].mxu0
        %v1820 = vadd.f32 0.0, %v1819
        %v1821 = vpop.f32.mrb[0].mxu0
        %1822 = vmatprep.mubr.bf16.mxu0 %v752
        %1823 = vmatmul.mubr.bf16.gmra.mrb[0].mxu0 %v691
        %v1824 = vpop.f32.mrb[0].mxu0
        %v1825 = vadd.f32 0.0, %v1824
        %v1826 = vpop.f32.mrb[0].mxu0
        %v1827 = vpop.f32.mrb[0].mxu0
        %v1828 = vadd.f32 0.0, %v1827
        %v1829 = vpop.f32.mrb[0].mxu0
        %1830 = vmatprep.mubr.bf16.mxu0 %v753
        %1831 = vmatmul.mubr.bf16.gmra.mrb[0].mxu0 %v692
        %v1832 = vpop.f32.mrb[0].mxu0
        %v1833 = vadd.f32 0.0, %v1832
        %v1834 = vpop.f32.mrb[0].mxu0
        %v1835 = vpop.f32.mrb[0].mxu0
        %v1836 = vadd.f32 0.0, %v1835
        %v1837 = vpop.f32.mrb[0].mxu0
        %1838 = vdwg.mxu0
        %1839 = vmatprep.subr.bf16.mxu0 0
        %1840 = vmatpush1.bf16.msra.mxu0 %v1646
        %1841 = vmatprep.subr.bf16.mxu0 0
        %1842 = vmatpush1.bf16.msra.mxu0 %v1647
        %1843 = vmatprep.subr.bf16.mxu0 0
        %1844 = vmatpush1.bf16.msra.mxu0 %v1648
        %1845 = vmatprep.subr.bf16.mxu0 0
        %1846 = vmatpush1.bf16.msra.mxu0 %v1649
        %1847 = vmatprep.subr.bf16.mxu0 0
        %1848 = vmatpush1.bf16.msra.mxu0 %v1650
        %1849 = vmatprep.subr.bf16.mxu0 0
        %1850 = vmatpush1.bf16.msra.mxu0 %v1651
        %1851 = vmatprep.subr.bf16.mxu0 0
        %1852 = vmatpush1.bf16.msra.mxu0 %v1652
        %1853 = vmatprep.subr.bf16.mxu0 0
        %1854 = vmatpush1.bf16.msra.mxu0 %v1653
        %1855 = vmatprep.subr.bf16.mxu0 0
        %1856 = vmatpush1.bf16.msra.mxu0 %v1654
        %1857 = vmatprep.subr.bf16.mxu0 0
        %1858 = vmatpush1.bf16.msra.mxu0 %v1655
        %1859 = vmatprep.subr.bf16.mxu0 0
        %1860 = vmatpush1.bf16.msra.mxu0 %v1656
        %1861 = vmatprep.subr.bf16.mxu0 0
        %1862 = vmatpush1.bf16.msra.mxu0 %v1657
        %1863 = vmatprep.subr.bf16.mxu0 0
        %1864 = vmatpush1.bf16.msra.mxu0 %v1658
        %1865 = vmatprep.subr.bf16.mxu0 0
        %1866 = vmatpush1.bf16.msra.mxu0 %v1659
        %1867 = vmatprep.subr.bf16.mxu0 0
        %1868 = vmatpush1.bf16.msra.mxu0 %v1660
        %1869 = vmatprep.subr.bf16.mxu0 0
        %1870 = vmatpush1.bf16.msra.mxu0 %v1661
        %1871 = vmatprep.mubr.bf16.mxu0 %v889
        %1872 = vmatmul.mubr.bf16.gmra.mrb[0].mxu0 %v828
        %v1873 = vpop.f32.mrb[0].mxu0
        %v1874 = vadd.f32 %v1809, %v1873
        %v1875 = vpop.f32.mrb[0].mxu0
        %v1876 = vpop.f32.mrb[0].mxu0
        %v1877 = vadd.f32 %v1812, %v1876
        %v1878 = vpop.f32.mrb[0].mxu0
        %1879 = vmatprep.mubr.bf16.mxu0 %v890
        %1880 = vmatmul.mubr.bf16.gmra.mrb[0].mxu0 %v829
        %v1881 = vpop.f32.mrb[0].mxu0
        %v1882 = vadd.f32 %v1817, %v1881
        %v1883 = vpop.f32.mrb[0].mxu0
        %v1884 = vpop.f32.mrb[0].mxu0
        %v1885 = vadd.f32 %v1820, %v1884
        %v1886 = vpop.f32.mrb[0].mxu0
        %1887 = vmatprep.mubr.bf16.mxu0 %v891
        %1888 = vmatmul.mubr.bf16.gmra.mrb[0].mxu0 %v830
        %v1889 = vpop.f32.mrb[0].mxu0
        %v1890 = vadd.f32 %v1825, %v1889
        %v1891 = vpop.f32.mrb[0].mxu0
        %v1892 = vpop.f32.mrb[0].mxu0
        %v1893 = vadd.f32 %v1828, %v1892
        %v1894 = vpop.f32.mrb[0].mxu0
        %1895 = vmatprep.mubr.bf16.mxu0 %v892
        %1896 = vmatmul.mubr.bf16.gmra.mrb[0].mxu0 %v831
        %v1897 = vpop.f32.mrb[0].mxu0
        %v1898 = vadd.f32 %v1833, %v1897
        %v1899 = vpop.f32.mrb[0].mxu0
        %v1900 = vpop.f32.mrb[0].mxu0
        %v1901 = vadd.f32 %v1836, %v1900
        %v1902 = vpop.f32.mrb[0].mxu0
        %1903 = vdwg.mxu0
        %1904 = vmatprep.subr.bf16.mxu0 0
        %1905 = vmatpush1.bf16.msra.mxu0 %v1662
        %1906 = vmatprep.subr.bf16.mxu0 0
        %1907 = vmatpush1.bf16.msra.mxu0 %v1663
        %1908 = vmatprep.subr.bf16.mxu0 0
        %1909 = vmatpush1.bf16.msra.mxu0 %v1664
        %1910 = vmatprep.subr.bf16.mxu0 0
        %1911 = vmatpush1.bf16.msra.mxu0 %v1665
        %1912 = vmatprep.subr.bf16.mxu0 0
        %1913 = vmatpush1.bf16.msra.mxu0 %v1666
        %1914 = vmatprep.subr.bf16.mxu0 0
        %1915 = vmatpush1.bf16.msra.mxu0 %v1667
        %1916 = vmatprep.subr.bf16.mxu0 0
        %1917 = vmatpush1.bf16.msra.mxu0 %v1668
        %1918 = vmatprep.subr.bf16.mxu0 0
        %1919 = vmatpush1.bf16.msra.mxu0 %v1669
        %1920 = vmatprep.subr.bf16.mxu0 0
        %1921 = vmatpush1.bf16.msra.mxu0 %v1670
        %1922 = vmatprep.subr.bf16.mxu0 0
        %1923 = vmatpush1.bf16.msra.mxu0 %v1671
        %1924 = vmatprep.subr.bf16.mxu0 0
        %1925 = vmatpush1.bf16.msra.mxu0 %v1672
        %1926 = vmatprep.subr.bf16.mxu0 0
        %1927 = vmatpush1.bf16.msra.mxu0 %v1673
        %1928 = vmatprep.subr.bf16.mxu0 0
        %1929 = vmatpush1.bf16.msra.mxu0 %v1674
        %1930 = vmatprep.subr.bf16.mxu0 0
        %1931 = vmatpush1.bf16.msra.mxu0 %v1675
        %1932 = vmatprep.subr.bf16.mxu0 0
        %1933 = vmatpush1.bf16.msra.mxu0 %v1676
        %1934 = vmatprep.subr.bf16.mxu0 0
        %1935 = vmatpush1.bf16.msra.mxu0 %v1677
        %1936 = vmatprep.mubr.bf16.mxu0 %v1011
        %1937 = vmatmul.mubr.bf16.gmra.mrb[0].mxu0 %v950
        %v1938 = vpop.f32.mrb[0].mxu0
        %v1939 = vadd.f32 %v1874, %v1938
        %v1940 = vpop.f32.mrb[0].mxu0
        %v1941 = vpop.f32.mrb[0].mxu0
        %v1942 = vadd.f32 %v1877, %v1941
        %v1943 = vpop.f32.mrb[0].mxu0
        %1944 = vmatprep.mubr.bf16.mxu0 %v1012
        %1945 = vmatmul.mubr.bf16.gmra.mrb[0].mxu0 %v951
        %v1946 = vpop.f32.mrb[0].mxu0
        %v1947 = vadd.f32 %v1882, %v1946
        %v1948 = vpop.f32.mrb[0].mxu0
        %v1949 = vpop.f32.mrb[0].mxu0
        %v1950 = vadd.f32 %v1885, %v1949
        %v1951 = vpop.f32.mrb[0].mxu0
        %1952 = vmatprep.mubr.bf16.mxu0 %v1013
        %1953 = vmatmul.mubr.bf16.gmra.mrb[0].mxu0 %v952
        %v1954 = vpop.f32.mrb[0].mxu0
        %v1955 = vadd.f32 %v1890, %v1954
        %v1956 = vpop.f32.mrb[0].mxu0
        %v1957 = vpop.f32.mrb[0].mxu0
        %v1958 = vadd.f32 %v1893, %v1957
        %v1959 = vpop.f32.mrb[0].mxu0
        %1960 = vmatprep.mubr.bf16.mxu0 %v1014
        %1961 = vmatmul.mubr.bf16.gmra.mrb[0].mxu0 %v953
        %v1962 = vpop.f32.mrb[0].mxu0
        %v1963 = vadd.f32 %v1898, %v1962
        %v1964 = vpop.f32.mrb[0].mxu0
        %v1965 = vpop.f32.mrb[0].mxu0
        %v1966 = vadd.f32 %v1901, %v1965
        %v1967 = vpop.f32.mrb[0].mxu0
        %1968 = vdwg.mxu0
        %1969 = vmatprep.subr.bf16.mxu0 0
        %1970 = vmatpush1.bf16.msra.mxu0 %v1678
        %1971 = vmatprep.subr.bf16.mxu0 0
        %1972 = vmatpush1.bf16.msra.mxu0 %v1679
        %1973 = vmatprep.subr.bf16.mxu0 0
        %1974 = vmatpush1.bf16.msra.mxu0 %v1680
        %1975 = vmatprep.subr.bf16.mxu0 0
        %1976 = vmatpush1.bf16.msra.mxu0 %v1681
        %1977 = vmatprep.subr.bf16.mxu0 0
        %1978 = vmatpush1.bf16.msra.mxu0 %v1682
        %1979 = vmatprep.subr.bf16.mxu0 0
        %1980 = vmatpush1.bf16.msra.mxu0 %v1683
        %1981 = vmatprep.subr.bf16.mxu0 0
        %1982 = vmatpush1.bf16.msra.mxu0 %v1684
        %1983 = vmatprep.subr.bf16.mxu0 0
        %1984 = vmatpush1.bf16.msra.mxu0 %v1685
        %1985 = vmatprep.subr.bf16.mxu0 0
        %1986 = vmatpush1.bf16.msra.mxu0 %v1686
        %1987 = vmatprep.subr.bf16.mxu0 0
        %1988 = vmatpush1.bf16.msra.mxu0 %v1687
        %1989 = vmatprep.subr.bf16.mxu0 0
        %1990 = vmatpush1.bf16.msra.mxu0 %v1688
        %1991 = vmatprep.subr.bf16.mxu0 0
        %1992 = vmatpush1.bf16.msra.mxu0 %v1689
        %1993 = vmatprep.subr.bf16.mxu0 0
        %1994 = vmatpush1.bf16.msra.mxu0 %v1690
        %1995 = vmatprep.subr.bf16.mxu0 0
        %1996 = vmatpush1.bf16.msra.mxu0 %v1691
        %1997 = vmatprep.subr.bf16.mxu0 0
        %1998 = vmatpush1.bf16.msra.mxu0 %v1692
        %1999 = vmatprep.subr.bf16.mxu0 0
        %2000 = vmatpush1.bf16.msra.mxu0 %v1693
        %2001 = vmatprep.mubr.bf16.mxu0 %v1133
        %2002 = vmatmul.mubr.bf16.gmra.mrb[0].mxu0 %v1072
        %v2003 = vpop.f32.mrb[0].mxu0
        %v2004 = vadd.f32 %v1939, %v2003
        %v2005 = vpop.f32.mrb[0].mxu0
        %v2006 = vpop.f32.mrb[0].mxu0
        %v2007 = vadd.f32 %v1942, %v2006
        %v2008 = vpop.f32.mrb[0].mxu0
        %2009 = vmatprep.mubr.bf16.mxu0 %v1134
        %2010 = vmatmul.mubr.bf16.gmra.mrb[0].mxu0 %v1073
        %v2011 = vpop.f32.mrb[0].mxu0
        %v2012 = vadd.f32 %v1947, %v2011
        %v2013 = vpop.f32.mrb[0].mxu0
        %v2014 = vpop.f32.mrb[0].mxu0
        %v2015 = vadd.f32 %v1950, %v2014
        %v2016 = vpop.f32.mrb[0].mxu0
        %2017 = vmatprep.mubr.bf16.mxu0 %v1135
        %2018 = vmatmul.mubr.bf16.gmra.mrb[0].mxu0 %v1074
        %v2019 = vpop.f32.mrb[0].mxu0
        %v2020 = vadd.f32 %v1955, %v2019
        %v2021 = vpop.f32.mrb[0].mxu0
        %v2022 = vpop.f32.mrb[0].mxu0
        %v2023 = vadd.f32 %v1958, %v2022
        %v2024 = vpop.f32.mrb[0].mxu0
        %2025 = vmatprep.mubr.bf16.mxu0 %v1136
        %2026 = vmatmul.mubr.bf16.gmra.mrb[0].mxu0 %v1075
        %v2027 = vpop.f32.mrb[0].mxu0
        %v2028 = vadd.f32 %v1963, %v2027
        %v2029 = vpop.f32.mrb[0].mxu0
        %v2030 = vpop.f32.mrb[0].mxu0
        %v2031 = vadd.f32 %v1966, %v2030
        %v2032 = vpop.f32.mrb[0].mxu0
        %2033 = vdwg.mxu0
        %2034 = vmatprep.subr.bf16.mxu0 0
        %2035 = vmatpush1.bf16.msra.mxu0 %v1694
        %2036 = vmatprep.subr.bf16.mxu0 0
        %2037 = vmatpush1.bf16.msra.mxu0 %v1695
        %2038 = vmatprep.subr.bf16.mxu0 0
        %2039 = vmatpush1.bf16.msra.mxu0 %v1696
        %2040 = vmatprep.subr.bf16.mxu0 0
        %2041 = vmatpush1.bf16.msra.mxu0 %v1697
        %2042 = vmatprep.subr.bf16.mxu0 0
        %2043 = vmatpush1.bf16.msra.mxu0 %v1698
        %2044 = vmatprep.subr.bf16.mxu0 0
        %2045 = vmatpush1.bf16.msra.mxu0 %v1699
        %2046 = vmatprep.subr.bf16.mxu0 0
        %2047 = vmatpush1.bf16.msra.mxu0 %v1700
        %2048 = vmatprep.subr.bf16.mxu0 0
        %2049 = vmatpush1.bf16.msra.mxu0 %v1701
        %2050 = vmatprep.subr.bf16.mxu0 0
        %2051 = vmatpush1.bf16.msra.mxu0 0
        %2052 = vmatprep.subr.bf16.mxu0 0
        %2053 = vmatpush1.bf16.msra.mxu0 0
        %2054 = vmatprep.subr.bf16.mxu0 0
        %2055 = vmatpush1.bf16.msra.mxu0 0
        %2056 = vmatprep.subr.bf16.mxu0 0
        %2057 = vmatpush1.bf16.msra.mxu0 0
        %2058 = vmatprep.subr.bf16.mxu0 0
        %2059 = vmatpush1.bf16.msra.mxu0 0
        %2060 = vmatprep.subr.bf16.mxu0 0
        %2061 = vmatpush1.bf16.msra.mxu0 0
        %2062 = vmatprep.subr.bf16.mxu0 0
        %2063 = vmatpush1.bf16.msra.mxu0 0
        %2064 = vmatprep.subr.bf16.mxu0 0
        %2065 = vmatpush1.bf16.msra.mxu0 0
        %2066 = vmatprep.mubr.bf16.mxu0 0
        %2067 = vmatmul.mubr.bf16.gmra.mrb[0].mxu0 %v1194
        %v2068 = vpop.f32.mrb[0].mxu0
        %v2069 = vadd.f32 %v2004, %v2068
        %v2070 = vpop.f32.mrb[0].mxu0
        %v2071 = vpop.f32.mrb[0].mxu0
        %v2072 = vadd.f32 %v2007, %v2071
        %v2073 = vpop.f32.mrb[0].mxu0
        %2074 = vmatprep.mubr.bf16.mxu0 0
        %2075 = vmatmul.mubr.bf16.gmra.mrb[0].mxu0 %v1195
        %v2076 = vpop.f32.mrb[0].mxu0
        %v2077 = vadd.f32 %v2012, %v2076
        %v2078 = vpop.f32.mrb[0].mxu0
        %v2079 = vpop.f32.mrb[0].mxu0
        %v2080 = vadd.f32 %v2015, %v2079
        %v2081 = vpop.f32.mrb[0].mxu0
        %2082 = vmatprep.mubr.bf16.mxu0 0
        %2083 = vmatmul.mubr.bf16.gmra.mrb[0].mxu0 %v1196
        %v2084 = vpop.f32.mrb[0].mxu0
        %v2085 = vadd.f32 %v2020, %v2084
        %v2086 = vpop.f32.mrb[0].mxu0
        %v2087 = vpop.f32.mrb[0].mxu0
        %v2088 = vadd.f32 %v2023, %v2087
        %v2089 = vpop.f32.mrb[0].mxu0
        %2090 = vmatprep.mubr.bf16.mxu0 0
        %2091 = vmatmul.mubr.bf16.gmra.mrb[0].mxu0 %v1197
        %v2092 = vpop.f32.mrb[0].mxu0
        %v2093 = vadd.f32 %v2028, %v2092
        %v2094 = vpop.f32.mrb[0].mxu0
        %v2095 = vpop.f32.mrb[0].mxu0
        %v2096 = vadd.f32 %v2031, %v2095
        %v2097 = vpop.f32.mrb[0].mxu0
        %2098 = vdwg.mxu0
        %v2099 = vld [vmem:[%s5] sm:$0x1]
        %v2101 = vlaneseq
        %v2102 = vshrl.u32 %v2101, 7
        %v2103 = vsub.s32 0, %v2102
        %v2104 = vrot.slane %v2099, %v2103
        %v2106 = vmul.f32 %v2069, %v2104
        %v2107 = vmul.f32 %v2072, %v2104
        %v2108 = vmul.f32 %v2077, %v2104
        %v2109 = vmul.f32 %v2080, %v2104
        %v2110 = vmul.f32 %v2085, %v2104
        %v2111 = vmul.f32 %v2088, %v2104
        %v2112 = vmul.f32 %v2093, %v2104
        %v2113 = vmul.f32 %v2096, %v2104
        %v2114 = vld [vmem:[%s6] sm:$0x1]
        %v2116 = vlaneseq
        %v2117 = vshrl.u32 %v2116, 7
        %v2118 = vsub.s32 0, %v2117
        %v2119 = vrot.slane %v2114, %v2118
        %v2121 = vadd.f32 %v2106, %v2119
        %v2122 = vadd.f32 %v2107, %v2119
        %v2123 = vadd.f32 %v2108, %v2119
        %v2124 = vadd.f32 %v2109, %v2119
        %v2125 = vadd.f32 %v2110, %v2119
        %v2126 = vadd.f32 %v2111, %v2119
        %v2127 = vadd.f32 %v2112, %v2119
        %v2128 = vadd.f32 %v2113, %v2119
        %v2129 = vmax.f32 %v2121, 0.0
        %v2130 = vmax.f32 %v2122, 0.0
        %v2131 = vmax.f32 %v2123, 0.0
        %v2132 = vmax.f32 %v2124, 0.0
        %v2133 = vmax.f32 %v2125, 0.0
        %v2134 = vmax.f32 %v2126, 0.0
        %v2135 = vmax.f32 %v2127, 0.0
        %v2136 = vmax.f32 %v2128, 0.0
        %v2137 = vpack.c.bf16 %v2130, %v2129
        %v2138 = vpack.c.bf16 %v2132, %v2131
        %v2139 = vpack.c.bf16 %v2134, %v2133
        %v2140 = vpack.c.bf16 %v2136, %v2135
        %v2141 = vld [vmem:[#allocation7] sm:$0xf]
        %v2142 = vld [vmem:[#allocation7 + $0x4] sm:$0xf]
        %v2143 = vld [vmem:[#allocation7 + $0x8] sm:$0xf]
        %v2144 = vld [vmem:[#allocation7 + $0xc] sm:$0xf]
        %v2145 = vld [vmem:[#allocation7 + $0x10] sm:$0xf]
        %v2146 = vld [vmem:[#allocation7 + $0x14] sm:$0xf]
        %v2147 = vld [vmem:[#allocation7 + $0x18] sm:$0xf]
        %v2148 = vld [vmem:[#allocation7 + $0x1c] sm:$0xf]
        %v2149 = vld [vmem:[#allocation7 + $0x20] sm:$0xf]
        %v2150 = vld [vmem:[#allocation7 + $0x24] sm:$0xf]
        %v2151 = vld [vmem:[#allocation7 + $0x28] sm:$0xf]
        %v2152 = vld [vmem:[#allocation7 + $0x2c] sm:$0xf]
        %v2153 = vld [vmem:[#allocation7 + $0x30] sm:$0xf]
        %v2154 = vld [vmem:[#allocation7 + $0x34] sm:$0xf]
        %v2155 = vld [vmem:[#allocation7 + $0x38] sm:$0xf]
        %v2156 = vld [vmem:[#allocation7 + $0x3c] sm:$0xf]
        %v2173 = vunpack.c.l.b16 %v2141
        %v2174 = vunpack.c.l.b16 %v2142
        %v2175 = vunpack.c.l.b16 %v2143
        %v2176 = vunpack.c.l.b16 %v2144
        %v2177 = vunpack.c.l.b16 %v2145
        %v2178 = vunpack.c.l.b16 %v2146
        %v2179 = vunpack.c.l.b16 %v2147
        %v2180 = vunpack.c.l.b16 %v2148
        %v2181 = vunpack.c.l.b16 %v2149
        %v2182 = vunpack.c.l.b16 %v2150
        %v2183 = vunpack.c.l.b16 %v2151
        %v2184 = vunpack.c.l.b16 %v2152
        %v2185 = vunpack.c.l.b16 %v2153
        %v2186 = vunpack.c.l.b16 %v2154
        %v2187 = vunpack.c.l.b16 %v2155
        %v2188 = vunpack.c.l.b16 %v2156
        %v2189 = vpack.c.b16 %v2174, %v2173
        %v2190 = vpack.c.b16 %v2176, %v2175
        %v2191 = vpack.c.b16 %v2178, %v2177
        %v2192 = vpack.c.b16 %v2180, %v2179
        %v2193 = vpack.c.b16 %v2182, %v2181
        %v2194 = vpack.c.b16 %v2184, %v2183
        %v2195 = vpack.c.b16 %v2186, %v2185
        %v2196 = vpack.c.b16 %v2188, %v2187
        %2205 = vmatprep.subr.bf16.mxu0 0
        %2206 = vmatpush1.bf16.msra.mxu0 %v2189
        %2207 = vmatprep.subr.bf16.mxu0 0
        %2208 = vmatpush1.bf16.msra.mxu0 %v2190
        %2209 = vmatprep.subr.bf16.mxu0 0
        %2210 = vmatpush1.bf16.msra.mxu0 %v2191
        %2211 = vmatprep.subr.bf16.mxu0 0
        %2212 = vmatpush1.bf16.msra.mxu0 %v2192
        %2213 = vmatprep.subr.bf16.mxu0 0
        %2214 = vmatpush1.bf16.msra.mxu0 %v2193
        %2215 = vmatprep.subr.bf16.mxu0 0
        %2216 = vmatpush1.bf16.msra.mxu0 %v2194
        %2217 = vmatprep.subr.bf16.mxu0 0
        %2218 = vmatpush1.bf16.msra.mxu0 %v2195
        %2219 = vmatprep.subr.bf16.mxu0 0
        %2220 = vmatpush1.bf16.msra.mxu0 %v2196
        %2221 = vmatprep.subr.bf16.mxu0 0
        %2222 = vmatpush1.bf16.msra.mxu0 0
        %2223 = vmatprep.subr.bf16.mxu0 0
        %2224 = vmatpush1.bf16.msra.mxu0 0
        %2225 = vmatprep.subr.bf16.mxu0 0
        %2226 = vmatpush1.bf16.msra.mxu0 0
        %2227 = vmatprep.subr.bf16.mxu0 0
        %2228 = vmatpush1.bf16.msra.mxu0 0
        %2229 = vmatprep.subr.bf16.mxu0 0
        %2230 = vmatpush1.bf16.msra.mxu0 0
        %2231 = vmatprep.subr.bf16.mxu0 0
        %2232 = vmatpush1.bf16.msra.mxu0 0
        %2233 = vmatprep.subr.bf16.mxu0 0
        %2234 = vmatpush1.bf16.msra.mxu0 0
        %2235 = vmatprep.subr.bf16.mxu0 0
        %2236 = vmatpush1.bf16.msra.mxu0 0
        %2237 = vmatprep.mubr.bf16.mxu0 0
        %2238 = vmatmul.mubr.bf16.gmra.mrb[0].mxu0 %v2137
        %v2239 = vpop.f32.mrb[0].mxu0
        %v2240 = vadd.f32 0.0, %v2239
        %v2241 = vpop.f32.mrb[0].mxu0
        %v2242 = vpop.f32.mrb[0].mxu0
        %v2243 = vadd.f32 0.0, %v2242
        %v2244 = vpop.f32.mrb[0].mxu0
        %2245 = vmatprep.mubr.bf16.mxu0 0
        %2246 = vmatmul.mubr.bf16.gmra.mrb[0].mxu0 %v2138
        %v2247 = vpop.f32.mrb[0].mxu0
        %v2248 = vadd.f32 0.0, %v2247
        %v2249 = vpop.f32.mrb[0].mxu0
        %v2250 = vpop.f32.mrb[0].mxu0
        %v2251 = vadd.f32 0.0, %v2250
        %v2252 = vpop.f32.mrb[0].mxu0
        %2253 = vmatprep.mubr.bf16.mxu0 0
        %2254 = vmatmul.mubr.bf16.gmra.mrb[0].mxu0 %v2139
        %v2255 = vpop.f32.mrb[0].mxu0
        %v2256 = vadd.f32 0.0, %v2255
        %v2257 = vpop.f32.mrb[0].mxu0
        %v2258 = vpop.f32.mrb[0].mxu0
        %v2259 = vadd.f32 0.0, %v2258
        %v2260 = vpop.f32.mrb[0].mxu0
        %2261 = vmatprep.mubr.bf16.mxu0 0
        %2262 = vmatmul.mubr.bf16.gmra.mrb[0].mxu0 %v2140
        %v2263 = vpop.f32.mrb[0].mxu0
        %v2264 = vadd.f32 0.0, %v2263
        %v2265 = vpop.f32.mrb[0].mxu0
        %v2266 = vpop.f32.mrb[0].mxu0
        %v2267 = vadd.f32 0.0, %v2266
        %v2268 = vpop.f32.mrb[0].mxu0
        %2269 = vdwg.mxu0
        %v2270 = vld [vmem:[%s8] sm:$0x1]
        %v2272 = vlaneseq
        %v2273 = vshrl.u32 %v2272, 7
        %v2274 = vsub.s32 0, %v2273
        %v2275 = vrot.slane %v2270, %v2274
        %v2277 = vmul.f32 %v2240, %v2275
        %v2278 = vmul.f32 %v2243, %v2275
        %v2279 = vmul.f32 %v2248, %v2275
        %v2280 = vmul.f32 %v2251, %v2275
        %v2281 = vmul.f32 %v2256, %v2275
        %v2282 = vmul.f32 %v2259, %v2275
        %v2283 = vmul.f32 %v2264, %v2275
        %v2284 = vmul.f32 %v2267, %v2275
        %v2285 = vld [vmem:[%s9] sm:$0x1]
        %v2287 = vlaneseq
        %v2288 = vshrl.u32 %v2287, 7
        %v2289 = vsub.s32 0, %v2288
        %v2290 = vrot.slane %v2285, %v2289
        %v2292 = vadd.f32 %v2277, %v2290
        %v2293 = vadd.f32 %v2278, %v2290
        %v2294 = vadd.f32 %v2279, %v2290
        %v2295 = vadd.f32 %v2280, %v2290
        %v2296 = vadd.f32 %v2281, %v2290
        %v2297 = vadd.f32 %v2282, %v2290
        %v2298 = vadd.f32 %v2283, %v2290
        %v2299 = vadd.f32 %v2284, %v2290
        %v2300 = vadd.f32 %v2292, %v435
        %v2301 = vadd.f32 %v2293, %v436
        %v2302 = vadd.f32 %v2294, %v437
        %v2303 = vadd.f32 %v2295, %v438
        %v2304 = vadd.f32 %v2296, %v439
        %v2305 = vadd.f32 %v2297, %v440
        %v2306 = vadd.f32 %v2298, %v441
        %v2307 = vadd.f32 %v2299, %v442
        %v2308 = vmax.f32 %v2300, 0.0
        %v2309 = vmax.f32 %v2301, 0.0
        %v2310 = vmax.f32 %v2302, 0.0
        %v2311 = vmax.f32 %v2303, 0.0
        %v2312 = vmax.f32 %v2304, 0.0
        %v2313 = vmax.f32 %v2305, 0.0
        %v2314 = vmax.f32 %v2306, 0.0
        %v2315 = vmax.f32 %v2307, 0.0
        %2316 = vst [vmem:[%s433] sm:$0xff] %v2308
        %2317 = vst [vmem:[%s433 + $0x8] sm:$0xff] %v2309
        %2318 = vst [vmem:[%s433 + $0x10] sm:$0xff] %v2310
        %2319 = vst [vmem:[%s433 + $0x18] sm:$0xff] %v2311
        %2320 = vst [vmem:[%s433 + $0x20] sm:$0xff] %v2312
        %2321 = vst [vmem:[%s433 + $0x28] sm:$0xff] %v2313
        %2322 = vst [vmem:[%s433 + $0x30] sm:$0xff] %v2314
        %2323 = vst [vmem:[%s433 + $0x38] sm:$0xff] %v2315
        %s2324 = sand.u32 %s273, 1
        %s2325 = scalar_lea.sflag [#allocation4], %s2324
        %s2326 = sand.u32 %s273, 1
        %s2327 = smul.addr %s2326, 64
        %s2328 = scalar_lea.vmem [#allocation8], %s2327
        // Predicated region
        $region77: #{tpu_custom_call.1} parent=63 // pred_check
          %p2329 = pneg %p283
        $region78: #{tpu_custom_call.1} parent=63 // pred_check_branch
          %2331 = sbr.rel (%p2329) target = $region80
        $region79: #{tpu_custom_call.1} parent=63 // pred_region
          %s2333 = ssub.s32 1024, 1024
          %2334 = vsyncadd %s2325, %s2333
          %s2335 = smul.addr %s29, 8
          %s2336 = smul.addr %s2335, 128
          %s2337 = scalar_lea.hbm %s11, %s2336
          %s2338 = sshll.u32 %s2328, 4
          %s2339 = int_to_ptr.vmem [resolvable:$true] %s2338
          %2344 = dma.vmem_to_hbm [thread:$0]  %s2339, 1024, %s2337, %s2325, 128, 128, 8
        $region80: #{tpu_custom_call.1} parent=63 // pred_fallthru
          _
      $region64: #{tpu_custom_call.1} parent=5 // pred_fallthru
        _
      %p2345 = scmp.le.s32.totalorder 2, %s24
      // Predicated region
      $region81: #{tpu_custom_call.1} parent=5 // pred_check
        %p2346 = pneg %p2345
      $region82: #{tpu_custom_call.1} parent=5 // pred_check_branch
        %2348 = sbr.rel (%p2346) target = $region84
      $region83: #{tpu_custom_call.1} parent=5 // pred_region
        %s2349 = ssub.s32 %s24, 2
        // Predicated region
        $region85: #{tpu_custom_call.1} parent=83 // pred_check
          %p2350 = pneg %p289
        $region86: #{tpu_custom_call.1} parent=83 // pred_check_branch
          %2352 = sbr.rel (%p2350) target = $region88
        $region87: #{tpu_custom_call.1} parent=83 // pred_region
          %s2353 = sand.u32 %s274, 1
          %s2354 = scalar_lea.sflag [#allocation4], %s2353
          %s2355 = sand.u32 %s274, 1
          %s2356 = smul.addr %s2355, 64
          %s2357 = scalar_lea.vmem [#allocation8], %s2356
          %2358 = dma.done %s2354, 1024
        $region88: #{tpu_custom_call.1} parent=83 // pred_fallthru
          _
      $region84: #{tpu_custom_call.1} parent=5 // pred_fallthru
        _
    $region6: #{tpu_custom_call.1} parent=1 // loop_footer
      %s28 = sadd.s32 1, %s24
    $region7: #{tpu_custom_call.1} parent=1 // loop_footer_branch
      %23 = sbr.rel target = $region3
    $region8: #{tpu_custom_call.1} parent=1 // loop_exit
      _
    %2359 = vsyncpa [#allocation3], 1
    %s2360 = scalar_lea.sflag [#allocation3], 1
    %2361 = vsyncpa %s2360, 1
    %2362 = vsyncpa [#allocation6], 1
    %2363 = vsyncpa [#allocation4], 1
    %s2364 = scalar_lea.sflag [#allocation4], 1
    %2365 = vsyncpa %s2364, 1

</llo_original>
